<compile_context>
chip_gen: v7x
topology: tpu7x:2x2x1
jax: 0.10.0
libtpu: 0.0.40
codegen_flags: <defaults>
</compile_context>

<pallas_src>
import jax
import jax.numpy as jnp
from jax.experimental import pallas as pl
from jax.experimental.pallas import tpu as pltpu


def _link_predictor_kernel(
    z_src_ref, z_dst_ref,
    w1_ref, b1_ref,
    w2_ref, b2_ref,
    w3_ref, b3_ref,
    w4_ref, b4_ref,
    out_ref,
):
    f32 = jnp.float32
    cdt = w1_ref.dtype    # MXU-input (compute) dtype: bf16 or f32
    adt = b1_ref.dtype    # bias/tanh (activation) dtype: bf16 on v6e/v7x, else f32

    # Stage 1: lin_src/lin_dst + concat + Linear(4C,8C) + BN fully folded into a
    # single K=2C matmul on the lane-concatenated input tile.
    z = jnp.concatenate(
        [z_src_ref[...].astype(cdt), z_dst_ref[...].astype(cdt)], axis=-1)
    h = jnp.dot(z, w1_ref[...], preferred_element_type=f32)          # [TN, 8C] f32
    h = jnp.tanh(h.astype(adt) + b1_ref[...])

    # Linear(8C,2C) + BN folded, Dropout = id (eval), Tanh.
    h = jnp.dot(h.astype(cdt), w2_ref[...], preferred_element_type=f32)
    h = jnp.tanh(h.astype(adt) + b2_ref[...])                        # [TN, 2C]

    # Linear(2C,C//2) + BN folded, Dropout = id (eval), Tanh.
    h = jnp.dot(h.astype(cdt), w3_ref[...], preferred_element_type=f32)
    h = jnp.tanh(h.astype(adt) + b3_ref[...])                        # [TN, C//2]

    # Linear(C//2, out_channels).
    h = jnp.dot(h.astype(cdt), w4_ref[...], preferred_element_type=f32)
    out_ref[...] = (h + b4_ref[...]).astype(out_ref.dtype)


def _default_act_dtype(compute_dtype):
    """bf16 bias/tanh only where the VPU/EUP support it (v6e/v7x)."""
    if compute_dtype != jnp.bfloat16:
        return jnp.float32
    try:
        kind = jax.devices()[0].device_kind.lower()
    except Exception:  # pragma: no cover - safe fallback
        return jnp.float32
    return jnp.bfloat16 if ("v6" in kind or "v7" in kind) else jnp.float32


def _fold_params(params, compute_dtype, act_dtype):
    """Fold BN into linears; fold lin_src/lin_dst + concat into the first MLP
    linear and stack it into one [2C, 8C] matrix (fold kept in f32)."""
    c2 = params["w_src"].shape[1]                       # 2C
    w1 = params["w1"] * params["s1"]
    b1 = params["b1"] * params["s1"] + params["t1"]
    w2 = params["w2"] * params["s2"]
    b2 = params["b2"] * params["s2"] + params["t2"]
    w3 = params["w3"] * params["s3"]
    b3 = params["b3"] * params["s3"] + params["t3"]
    # concat([h_src, h_dst]) @ W1 == concat([z_src, z_dst]) @ [[Wsrc@W1_top],
    #                                                          [Wdst@W1_bot]]
    w1_top, w1_bot = w1[:c2, :], w1[c2:, :]
    w_cat = jnp.concatenate(
        [params["w_src"] @ w1_top, params["w_dst"] @ w1_bot], axis=0)  # [2C, 8C]
    b1_f = params["b_src"] @ w1_top + params["b_dst"] @ w1_bot + b1
    cd, ad = compute_dtype, act_dtype
    return (
        w_cat.astype(cd), b1_f.astype(ad),
        w2.astype(cd), b2.astype(ad),
        w3.astype(cd), b3.astype(ad),
        params["w4"].astype(cd), params["b4"].astype(jnp.float32),
    )


def _pick_grid(n, tile_n):
    """Row tile & step count: >= 2 steps, even step count (v7x 2-TC split),
    minimal row padding, tile a multiple of 8 sublanes."""
    tile_n = max(8, (tile_n // 8) * 8)
    steps = max(2, pl.cdiv(n, tile_n))
    if steps % 2:
        steps += 1
    t = pl.cdiv(pl.cdiv(n, steps), 8) * 8
    return t, steps


def link_predictor_forward(z_src, z_dst, params, *,
                           tile_n=2048, compute_dtype=jnp.bfloat16,
                           act_dtype=None):
    """Fused LinkPredictor eval-mode forward on TPU via Pallas."""
    n, c = z_src.shape
    out_channels = params["w4"].shape[1]
    if act_dtype is None:
        act_dtype = _default_act_dtype(compute_dtype)

    weight_args = _fold_params(params, compute_dtype, act_dtype)
    w_cat = weight_args[0]
    c2_in, c8 = w_cat.shape                 # 2C, 8C
    c2 = weight_args[2].shape[1]            # 2C (stage-2 output)
    ch = weight_args[4].shape[1]            # C//2

    t, steps = _pick_grid(n, tile_n)
    n_pad = t * steps
    if n_pad != n:
        pad = ((0, n_pad - n), (0, 0))
        z_src = jnp.pad(z_src, pad)
        z_dst = jnp.pad(z_dst, pad)
    # Inputs stay f32 in HBM; the cast to the MXU dtype happens in-kernel.

    def row_spec(f):
        return pl.BlockSpec((t, f), lambda i: (i, 0))

    def resident_spec(a):  # whole array, same block every step -> stays in VMEM
        return pl.BlockSpec(a.shape, lambda i: (0, 0))

    in_specs = ([row_spec(c), row_spec(c)]
                + [resident_spec(a) for a in weight_args])
    out_specs = row_spec(out_channels)

    flops = 2 * n_pad * (c2_in * c8 + c8 * c2 + c2 * ch + ch * out_channels)
    transcendentals = n_pad * (c8 + c2 + ch)
    w_bytes = sum(int(a.size) * a.dtype.itemsize for a in weight_args)
    bytes_accessed = ((z_src.size + z_dst.size) * 4
                      + w_bytes
                      + n_pad * out_channels * 4)

    # Right-sized VMEM request: double-buffered f32 input/output blocks,
    # (default double-buffered) resident weights, f32 stage intermediates,
    # then a 2x safety margin; never below the 32 MiB scoped default.
    vmem_need = (2 * (2 * t * c * 4)            # z_src/z_dst blocks, 2 buffers each
                 + 2 * t * out_channels * 4     # output block, 2 buffers
                 + 2 * w_bytes                  # resident weights, 2 buffers
                 + 4 * t * c8 * 4)              # f32 intermediates + slack
    vmem_limit = int(min(max(2 * vmem_need, 32 << 20), 100 << 20))

    out = pl.pallas_call(
        _link_predictor_kernel,
        out_shape=jax.ShapeDtypeStruct((n_pad, out_channels), jnp.float32),
        grid=(steps,),
        in_specs=in_specs,
        out_specs=out_specs,
        compiler_params=pltpu.CompilerParams(
            dimension_semantics=("parallel",),
            vmem_limit_bytes=vmem_limit,
        ),
        cost_estimate=pl.CostEstimate(
            flops=int(flops),
            transcendentals=int(transcendentals),
            bytes_accessed=int(bytes_accessed),
        ),
    )(z_src, z_dst, *weight_args)
    return out[:n]


def make_params(key, in_channels, out_channels):
    """Deterministic synthetic parameters matching LinkPredictor.__init__ shapes."""
    c = in_channels
    dims = {
        "_src": (c, 2 * c),
        "_dst": (c, 2 * c),
        "1": (4 * c, 8 * c),
        "2": (8 * c, 2 * c),
        "3": (2 * c, c // 2),
        "4": (c // 2, out_channels),
    }
    params = {}
    keys = jax.random.split(key, 2 * len(dims) + 6)
    ki = 0
    for name, (fin, fout) in dims.items():
        params[f"w{name}"] = 0.1 * jax.random.normal(keys[ki], (fin, fout), jnp.float32); ki += 1
        params[f"b{name}"] = 0.1 * jax.random.normal(keys[ki], (1, fout), jnp.float32); ki += 1

    # BatchNorm1d layers (after linears 1, 2, 3): eval mode, running_mean=0,
    # running_var=1, learnable gamma/beta -> per-feature scale/shift.
    eps = 1e-5
    bn_dims = {"1": 8 * c, "2": 2 * c, "3": c // 2}
    for name, f in bn_dims.items():
        gamma = 1.0 + 0.05 * jax.random.normal(keys[ki], (1, f), jnp.float32); ki += 1
        beta = 0.05 * jax.random.normal(keys[ki], (1, f), jnp.float32); ki += 1
        running_mean = jnp.zeros((1, f), jnp.float32)
        running_var = jnp.ones((1, f), jnp.float32)
        scale = gamma / jnp.sqrt(running_var + eps)
        shift = beta - running_mean * scale
        params[f"s{name}"] = scale
        params[f"t{name}"] = shift
    return params


def reference_forward(z_src, z_dst, params):
    """Plain-JAX fp32 reference mirroring the PyTorch eval-mode forward."""
    h = jnp.concatenate(
        [z_src @ params["w_src"] + params["b_src"],
         z_dst @ params["w_dst"] + params["b_dst"]], axis=-1)
    for i in ("1", "2", "3"):
        h = h @ params[f"w{i}"] + params[f"b{i}"]
        h = h * params[f"s{i}"] + params[f"t{i}"]
        h = jnp.tanh(h)
    return h @ params["w4"] + params["b4"]


if __name__ == "__main__":
    in_channels = 32
    out_channels = 8
    n_edges = 300  # not a multiple of the tile -> exercises padding + even 2-step grid

    key = jax.random.PRNGKey(0)
    k_src, k_dst, k_params = jax.random.split(key, 3)
    z_src = jax.random.normal(k_src, (n_edges, in_channels), jnp.float32)
    z_dst = jax.random.normal(k_dst, (n_edges, in_channels), jnp.float32)
    params = make_params(k_params, in_channels, out_channels)

    ref = reference_forward(z_src, z_dst, params)

    # fp32 compute path: should match the unfused reference tightly.
    out_f32 = jax.block_until_ready(
        link_predictor_forward(z_src, z_dst, params, compute_dtype=jnp.float32))
    assert out_f32.shape == (n_edges, out_channels)
    assert jnp.allclose(out_f32, ref, atol=1e-3, rtol=1e-3), "fp32 mismatch vs reference"

    # bf16 MXU path (default; bf16 bias/tanh auto-enabled on v6e/v7x only).
    out_bf16 = jax.block_until_ready(
        link_predictor_forward(z_src, z_dst, params))
    assert out_bf16.shape == (n_edges, out_channels)
    assert jnp.allclose(out_bf16, ref, atol=8e-2, rtol=8e-2), "bf16 mismatch vs reference"

    print("KERNEL_OK")
</pallas_src>

<mosaic_0001>
module attributes {stable_mosaic.version = 11 : i64} {
  func.func @_link_predictor_kernel(%arg0: i32, %arg1: memref<152x32xf32, #tpu.memory_space<vmem>>, %arg2: memref<152x32xf32, #tpu.memory_space<vmem>>, %arg3: memref<64x256xf32, #tpu.memory_space<vmem>>, %arg4: memref<1x256xf32, #tpu.memory_space<vmem>>, %arg5: memref<256x64xf32, #tpu.memory_space<vmem>>, %arg6: memref<1x64xf32, #tpu.memory_space<vmem>>, %arg7: memref<64x16xf32, #tpu.memory_space<vmem>>, %arg8: memref<1x16xf32, #tpu.memory_space<vmem>>, %arg9: memref<16x8xf32, #tpu.memory_space<vmem>>, %arg10: memref<1x8xf32, #tpu.memory_space<vmem>>, %arg11: memref<152x8xf32, #tpu.memory_space<vmem>>) attributes {dimension_semantics = [#tpu.dimension_semantics<parallel>], iteration_bounds = array<i64: 2>, scalar_prefetch = 0 : i64, scratch_operands = 0 : i64, tpu.core_type = #tpu.core_type<tc>, window_params = [{transform_indices = @transform_0, window_bounds = array<i64: 152, 32>}, {transform_indices = @transform_1, window_bounds = array<i64: 152, 32>}, {pipeline_mode = #tpu.pipeline_mode<synchronous>, transform_indices = @transform_2, window_bounds = array<i64: 64, 256>}, {pipeline_mode = #tpu.pipeline_mode<synchronous>, transform_indices = @transform_3, window_bounds = array<i64: 1, 256>}, {pipeline_mode = #tpu.pipeline_mode<synchronous>, transform_indices = @transform_4, window_bounds = array<i64: 256, 64>}, {pipeline_mode = #tpu.pipeline_mode<synchronous>, transform_indices = @transform_5, window_bounds = array<i64: 1, 64>}, {pipeline_mode = #tpu.pipeline_mode<synchronous>, transform_indices = @transform_6, window_bounds = array<i64: 64, 16>}, {pipeline_mode = #tpu.pipeline_mode<synchronous>, transform_indices = @transform_7, window_bounds = array<i64: 1, 16>}, {pipeline_mode = #tpu.pipeline_mode<synchronous>, transform_indices = @transform_8, window_bounds = array<i64: 16, 8>}, {pipeline_mode = #tpu.pipeline_mode<synchronous>, transform_indices = @transform_9, window_bounds = array<i64: 1, 8>}, {transform_indices = @transform_10, window_bounds = array<i64: 152, 8>}]} {
    %c0 = arith.constant 0 : index
    %c0_0 = arith.constant 0 : index
    %0 = vector.load %arg1[%c0, %c0_0] : memref<152x32xf32, #tpu.memory_space<vmem>>, vector<152x32xf32>
    %c0_1 = arith.constant 0 : index
    %c0_2 = arith.constant 0 : index
    %1 = vector.load %arg2[%c0_1, %c0_2] : memref<152x32xf32, #tpu.memory_space<vmem>>, vector<152x32xf32>
    %2 = tpu.concatenate %0, %1 in 1 : vector<152x32xf32>, vector<152x32xf32> -> vector<152x64xf32>
    %c0_3 = arith.constant 0 : index
    %c0_4 = arith.constant 0 : index
    %3 = vector.load %arg3[%c0_3, %c0_4] : memref<64x256xf32, #tpu.memory_space<vmem>>, vector<64x256xf32>
    %cst = arith.constant dense<0.000000e+00> : vector<152x256xf32>
    %4 = tpu.matmul %2, %3, %cst {dimension_numbers = #tpu.dot_dimension_numbers<[1], [0], [0], [1], [0, 0, 1, 1], [], []>} : vector<152x64xf32>, vector<64x256xf32>, vector<152x256xf32> -> vector<152x256xf32>
    %c0_5 = arith.constant 0 : index
    %c0_6 = arith.constant 0 : index
    %5 = vector.load %arg4[%c0_5, %c0_6] : memref<1x256xf32, #tpu.memory_space<vmem>>, vector<1x256xf32>
    %6 = vector.broadcast %5 : vector<1x256xf32> to vector<152x256xf32>
    %7 = arith.addf %4, %6 : vector<152x256xf32>
    %8 = math.tanh %7 : vector<152x256xf32>
    %c0_7 = arith.constant 0 : index
    %c0_8 = arith.constant 0 : index
    %9 = vector.load %arg5[%c0_7, %c0_8] : memref<256x64xf32, #tpu.memory_space<vmem>>, vector<256x64xf32>
    %cst_9 = arith.constant dense<0.000000e+00> : vector<152x64xf32>
    %10 = tpu.matmul %8, %9, %cst_9 {dimension_numbers = #tpu.dot_dimension_numbers<[1], [0], [0], [1], [0, 0, 1, 1], [], []>} : vector<152x256xf32>, vector<256x64xf32>, vector<152x64xf32> -> vector<152x64xf32>
    %c0_10 = arith.constant 0 : index
    %c0_11 = arith.constant 0 : index
    %11 = vector.load %arg6[%c0_10, %c0_11] : memref<1x64xf32, #tpu.memory_space<vmem>>, vector<1x64xf32>
    %12 = vector.broadcast %11 : vector<1x64xf32> to vector<152x64xf32>
    %13 = arith.addf %10, %12 : vector<152x64xf32>
    %14 = math.tanh %13 : vector<152x64xf32>
    %c0_12 = arith.constant 0 : index
    %c0_13 = arith.constant 0 : index
    %15 = vector.load %arg7[%c0_12, %c0_13] : memref<64x16xf32, #tpu.memory_space<vmem>>, vector<64x16xf32>
    %cst_14 = arith.constant dense<0.000000e+00> : vector<152x16xf32>
    %16 = tpu.matmul %14, %15, %cst_14 {dimension_numbers = #tpu.dot_dimension_numbers<[1], [0], [0], [1], [0, 0, 1, 1], [], []>} : vector<152x64xf32>, vector<64x16xf32>, vector<152x16xf32> -> vector<152x16xf32>
    %c0_15 = arith.constant 0 : index
    %c0_16 = arith.constant 0 : index
    %17 = vector.load %arg8[%c0_15, %c0_16] : memref<1x16xf32, #tpu.memory_space<vmem>>, vector<1x16xf32>
    %18 = vector.broadcast %17 : vector<1x16xf32> to vector<152x16xf32>
    %19 = arith.addf %16, %18 : vector<152x16xf32>
    %20 = math.tanh %19 : vector<152x16xf32>
    %c0_17 = arith.constant 0 : index
    %c0_18 = arith.constant 0 : index
    %21 = vector.load %arg9[%c0_17, %c0_18] : memref<16x8xf32, #tpu.memory_space<vmem>>, vector<16x8xf32>
    %cst_19 = arith.constant dense<0.000000e+00> : vector<152x8xf32>
    %22 = tpu.matmul %20, %21, %cst_19 {dimension_numbers = #tpu.dot_dimension_numbers<[1], [0], [0], [1], [0, 0, 1, 1], [], []>} : vector<152x16xf32>, vector<16x8xf32>, vector<152x8xf32> -> vector<152x8xf32>
    %c0_20 = arith.constant 0 : index
    %c0_21 = arith.constant 0 : index
    %23 = vector.load %arg10[%c0_20, %c0_21] : memref<1x8xf32, #tpu.memory_space<vmem>>, vector<1x8xf32>
    %24 = vector.broadcast %23 : vector<1x8xf32> to vector<152x8xf32>
    %25 = arith.addf %22, %24 : vector<152x8xf32>
    %c0_22 = arith.constant 0 : index
    %c0_23 = arith.constant 0 : index
    %26 = vector.load %arg11[%c0_22, %c0_23] : memref<152x8xf32, #tpu.memory_space<vmem>>, vector<152x8xf32>
    tpu.vector_store %arg11[%c0_22, %c0_23], %25 {strides = array<i32>} : memref<152x8xf32, #tpu.memory_space<vmem>>, vector<152x8xf32>,
    return
  }
  func.func @transform_0(%arg0: i32) -> (i32, i32) {
    %c0_i32 = arith.constant 0 : i32
    %c0_i32_0 = arith.constant 0 : i32
    return %arg0, %c0_i32 : i32, i32
  }
  func.func @transform_1(%arg0: i32) -> (i32, i32) {
    %c0_i32 = arith.constant 0 : i32
    %c0_i32_0 = arith.constant 0 : i32
    return %arg0, %c0_i32 : i32, i32
  }
  func.func @transform_2(%arg0: i32) -> (i32, i32) {
    %c0_i32 = arith.constant 0 : i32
    %c0_i32_0 = arith.constant 0 : i32
    %c0_i32_1 = arith.constant 0 : i32
    return %c0_i32, %c0_i32_0 : i32, i32
  }
  func.func @transform_3(%arg0: i32) -> (i32, i32) {
    %c0_i32 = arith.constant 0 : i32
    %c0_i32_0 = arith.constant 0 : i32
    %c0_i32_1 = arith.constant 0 : i32
    return %c0_i32, %c0_i32_0 : i32, i32
  }
  func.func @transform_4(%arg0: i32) -> (i32, i32) {
    %c0_i32 = arith.constant 0 : i32
    %c0_i32_0 = arith.constant 0 : i32
    %c0_i32_1 = arith.constant 0 : i32
    return %c0_i32, %c0_i32_0 : i32, i32
  }
  func.func @transform_5(%arg0: i32) -> (i32, i32) {
    %c0_i32 = arith.constant 0 : i32
    %c0_i32_0 = arith.constant 0 : i32
    %c0_i32_1 = arith.constant 0 : i32
    return %c0_i32, %c0_i32_0 : i32, i32
  }
  func.func @transform_6(%arg0: i32) -> (i32, i32) {
    %c0_i32 = arith.constant 0 : i32
    %c0_i32_0 = arith.constant 0 : i32
    %c0_i32_1 = arith.constant 0 : i32
    return %c0_i32, %c0_i32_0 : i32, i32
  }
  func.func @transform_7(%arg0: i32) -> (i32, i32) {
    %c0_i32 = arith.constant 0 : i32
    %c0_i32_0 = arith.constant 0 : i32
    %c0_i32_1 = arith.constant 0 : i32
    return %c0_i32, %c0_i32_0 : i32, i32
  }
  func.func @transform_8(%arg0: i32) -> (i32, i32) {
    %c0_i32 = arith.constant 0 : i32
    %c0_i32_0 = arith.constant 0 : i32
    %c0_i32_1 = arith.constant 0 : i32
    return %c0_i32, %c0_i32_0 : i32, i32
  }
  func.func @transform_9(%arg0: i32) -> (i32, i32) {
    %c0_i32 = arith.constant 0 : i32
    %c0_i32_0 = arith.constant 0 : i32
    %c0_i32_1 = arith.constant 0 : i32
    return %c0_i32, %c0_i32_0 : i32, i32
  }
  func.func @transform_10(%arg0: i32) -> (i32, i32) {
    %c0_i32 = arith.constant 0 : i32
    %c0_i32_0 = arith.constant 0 : i32
    return %arg0, %c0_i32 : i32, i32
  }
}

</mosaic_0001>

<llo_original>
// kernel: tpu_custom_call.1
$region0: #{tpu_custom_call.1}
  #allocation0 [shape = 'u32[]', space=smem, size = 0x4, offset = 0x4, fixed_abs, tag = 'smem constant byte address 0x4 - core index']
  #allocation1 [shape = 'u32[144,128]{1,0:T(1,128)}', space=vmem, size = 0x12000, scoped, tag = 'internal scratch']
  %s0 = inlined_call_operand.vmem [shape: f32[304,32], index: 0, kind: input, shape index: {}]
  %s1 = inlined_call_operand.vmem [shape: f32[304,32], index: 1, kind: input, shape index: {}]
  %s2 = inlined_call_operand.vmem [shape: f32[64,256], index: 2, kind: input, shape index: {}]
  %s3 = inlined_call_operand.vmem [shape: f32[1,256], index: 3, kind: input, shape index: {}]
  %s4 = inlined_call_operand.vmem [shape: f32[256,64], index: 4, kind: input, shape index: {}]
  %s5 = inlined_call_operand.vmem [shape: f32[1,64], index: 5, kind: input, shape index: {}]
  %s6 = inlined_call_operand.vmem [shape: f32[64,16], index: 6, kind: input, shape index: {}]
  %s7 = inlined_call_operand.vmem [shape: f32[1,16], index: 7, kind: input, shape index: {}]
  %s8 = inlined_call_operand.vmem [shape: f32[16,8], index: 8, kind: input, shape index: {}]
  %s9 = inlined_call_operand.vmem [shape: f32[1,8], index: 9, kind: input, shape index: {}]
  %s10 = inlined_call_operand.vmem [shape: f32[304,8], index: 10, kind: output, shape index: {}]
  %s11 = sld [smem:[#allocation0]]
  $region73: #{tpu_custom_call.1} parent=0
    _
  %s13 = ssub.s32 1, %s11
  %s14 = scalar_select 0, %s13, %s11
  loop: start=0, step=1, limit=4
  $region2: #{tpu_custom_call.1} parent=0 // loop_pre_header
    _
  $region3: #{tpu_custom_call.1} parent=0 // loop_header
    %s16 = sphi 0, %s20
    %p17 = scmp.ge.s32.totalorder %s16, 4
    %s26 = sphi 0, %s28
    %s29 = sphi 0, %s26
    %s30 = sphi 0, %s29
    %s46 = sphi 0, %s30
    %s52 = sphi 0, %s54
    %s55 = sphi 0, %s52
    %s56 = sphi 0, %s55
    %s72 = sphi 0, %s56
    %s76 = sphi 0, %s76
    %s78 = sphi 0, %s76
    %s79 = sphi 0, %s78
    %s93 = sphi 0, %s79
    %s97 = sphi 0, %s97
    %s99 = sphi 0, %s97
    %s100 = sphi 0, %s99
    %s114 = sphi 0, %s100
    %s118 = sphi 0, %s118
    %s120 = sphi 0, %s118
    %s121 = sphi 0, %s120
    %s135 = sphi 0, %s121
    %s139 = sphi 0, %s139
    %s141 = sphi 0, %s139
    %s142 = sphi 0, %s141
    %s156 = sphi 0, %s142
    %s160 = sphi 0, %s160
    %s162 = sphi 0, %s160
    %s163 = sphi 0, %s162
    %s177 = sphi 0, %s163
    %s181 = sphi 0, %s181
    %s183 = sphi 0, %s181
    %s184 = sphi 0, %s183
    %s198 = sphi 0, %s184
    %s202 = sphi 0, %s202
    %s204 = sphi 0, %s202
    %s205 = sphi 0, %s204
    %s219 = sphi 0, %s205
    %s223 = sphi 0, %s223
    %s225 = sphi 0, %s223
    %s226 = sphi 0, %s225
    %s240 = sphi 0, %s226
    %s246 = sphi 0, %s248
    %s249 = sphi 0, %s246
    %s250 = sphi 0, %s249
    %s266 = sphi 0, %s250
  $region4: #{tpu_custom_call.1} parent=0 // loop_header_branch
    %19 = sbr.rel (%p17) target = $region8
  $region5: #{tpu_custom_call.1} parent=0 // loop_body
    %s21 = ssub.s32 %s16, 1
    %s22 = ssub.s32 %s16, 2
    %s23 = sadd.s32 %s16, 1
    %s24 = ssub.s32 %s16, %s23
    %p25 = scmp.eq.s32.totalorder %s24, 0
    %s27 = sadd.s32 %s26, 1
    %s28 = scalar_select %p25, %s26, %s27
    %p31 = pneg %p25
    %p32 = scmp.eq.s32.totalorder %s16, 1
    %p33 = por %p31, %p32
    %p34 = scmp.ne.s32.totalorder %s26, %s29
    %p35 = scmp.eq.s32.totalorder %s16, 0
    %p36 = por %p34, %p35
    %p37 = scmp.ne.s32.totalorder %s26, %s29
    %p38 = scmp.eq.s32.totalorder %s21, 1
    %p39 = por %p37, %p38
    %p40 = scmp.ne.s32.totalorder %s29, %s30
    %p41 = scmp.eq.s32.totalorder %s21, 0
    %p42 = por %p40, %p41
    %p43 = scmp.ne.s32.totalorder %s29, %s30
    %p44 = scmp.eq.s32.totalorder %s22, 1
    %p45 = por %p43, %p44
    %p47 = scmp.ne.s32.totalorder %s30, %s46
    %p48 = scmp.eq.s32.totalorder %s22, 0
    %p49 = por %p47, %p48
    %s50 = ssub.s32 %s16, %s23
    %p51 = scmp.eq.s32.totalorder %s50, 0
    %s53 = sadd.s32 %s52, 1
    %s54 = scalar_select %p51, %s52, %s53
    %p57 = pneg %p51
    %p58 = scmp.eq.s32.totalorder %s16, 1
    %p59 = por %p57, %p58
    %p60 = scmp.ne.s32.totalorder %s52, %s55
    %p61 = scmp.eq.s32.totalorder %s16, 0
    %p62 = por %p60, %p61
    %p63 = scmp.ne.s32.totalorder %s52, %s55
    %p64 = scmp.eq.s32.totalorder %s21, 1
    %p65 = por %p63, %p64
    %p66 = scmp.ne.s32.totalorder %s55, %s56
    %p67 = scmp.eq.s32.totalorder %s21, 0
    %p68 = por %p66, %p67
    %p69 = scmp.ne.s32.totalorder %s55, %s56
    %p70 = scmp.eq.s32.totalorder %s22, 1
    %p71 = por %p69, %p70
    %p73 = scmp.ne.s32.totalorder %s56, %s72
    %p74 = scmp.eq.s32.totalorder %s22, 0
    %p75 = por %p73, %p74
    %s77 = sadd.s32 %s76, 1
    %p80 = scmp.eq.s32.totalorder %s16, 1
    %p81 = scmp.ne.s32.totalorder %s76, %s78
    %p82 = scmp.eq.s32.totalorder %s16, 0
    %p83 = por %p81, %p82
    %p84 = scmp.ne.s32.totalorder %s76, %s78
    %p85 = scmp.eq.s32.totalorder %s21, 1
    %p86 = por %p84, %p85
    %p87 = scmp.ne.s32.totalorder %s78, %s79
    %p88 = scmp.eq.s32.totalorder %s21, 0
    %p89 = por %p87, %p88
    %p90 = scmp.ne.s32.totalorder %s78, %s79
    %p91 = scmp.eq.s32.totalorder %s22, 1
    %p92 = por %p90, %p91
    %p94 = scmp.ne.s32.totalorder %s79, %s93
    %p95 = scmp.eq.s32.totalorder %s22, 0
    %p96 = por %p94, %p95
    %s98 = sadd.s32 %s97, 1
    %p101 = scmp.eq.s32.totalorder %s16, 1
    %p102 = scmp.ne.s32.totalorder %s97, %s99
    %p103 = scmp.eq.s32.totalorder %s16, 0
    %p104 = por %p102, %p103
    %p105 = scmp.ne.s32.totalorder %s97, %s99
    %p106 = scmp.eq.s32.totalorder %s21, 1
    %p107 = por %p105, %p106
    %p108 = scmp.ne.s32.totalorder %s99, %s100
    %p109 = scmp.eq.s32.totalorder %s21, 0
    %p110 = por %p108, %p109
    %p111 = scmp.ne.s32.totalorder %s99, %s100
    %p112 = scmp.eq.s32.totalorder %s22, 1
    %p113 = por %p111, %p112
    %p115 = scmp.ne.s32.totalorder %s100, %s114
    %p116 = scmp.eq.s32.totalorder %s22, 0
    %p117 = por %p115, %p116
    %s119 = sadd.s32 %s118, 1
    %p122 = scmp.eq.s32.totalorder %s16, 1
    %p123 = scmp.ne.s32.totalorder %s118, %s120
    %p124 = scmp.eq.s32.totalorder %s16, 0
    %p125 = por %p123, %p124
    %p126 = scmp.ne.s32.totalorder %s118, %s120
    %p127 = scmp.eq.s32.totalorder %s21, 1
    %p128 = por %p126, %p127
    %p129 = scmp.ne.s32.totalorder %s120, %s121
    %p130 = scmp.eq.s32.totalorder %s21, 0
    %p131 = por %p129, %p130
    %p132 = scmp.ne.s32.totalorder %s120, %s121
    %p133 = scmp.eq.s32.totalorder %s22, 1
    %p134 = por %p132, %p133
    %p136 = scmp.ne.s32.totalorder %s121, %s135
    %p137 = scmp.eq.s32.totalorder %s22, 0
    %p138 = por %p136, %p137
    %s140 = sadd.s32 %s139, 1
    %p143 = scmp.eq.s32.totalorder %s16, 1
    %p144 = scmp.ne.s32.totalorder %s139, %s141
    %p145 = scmp.eq.s32.totalorder %s16, 0
    %p146 = por %p144, %p145
    %p147 = scmp.ne.s32.totalorder %s139, %s141
    %p148 = scmp.eq.s32.totalorder %s21, 1
    %p149 = por %p147, %p148
    %p150 = scmp.ne.s32.totalorder %s141, %s142
    %p151 = scmp.eq.s32.totalorder %s21, 0
    %p152 = por %p150, %p151
    %p153 = scmp.ne.s32.totalorder %s141, %s142
    %p154 = scmp.eq.s32.totalorder %s22, 1
    %p155 = por %p153, %p154
    %p157 = scmp.ne.s32.totalorder %s142, %s156
    %p158 = scmp.eq.s32.totalorder %s22, 0
    %p159 = por %p157, %p158
    %s161 = sadd.s32 %s160, 1
    %p164 = scmp.eq.s32.totalorder %s16, 1
    %p165 = scmp.ne.s32.totalorder %s160, %s162
    %p166 = scmp.eq.s32.totalorder %s16, 0
    %p167 = por %p165, %p166
    %p168 = scmp.ne.s32.totalorder %s160, %s162
    %p169 = scmp.eq.s32.totalorder %s21, 1
    %p170 = por %p168, %p169
    %p171 = scmp.ne.s32.totalorder %s162, %s163
    %p172 = scmp.eq.s32.totalorder %s21, 0
    %p173 = por %p171, %p172
    %p174 = scmp.ne.s32.totalorder %s162, %s163
    %p175 = scmp.eq.s32.totalorder %s22, 1
    %p176 = por %p174, %p175
    %p178 = scmp.ne.s32.totalorder %s163, %s177
    %p179 = scmp.eq.s32.totalorder %s22, 0
    %p180 = por %p178, %p179
    %s182 = sadd.s32 %s181, 1
    %p185 = scmp.eq.s32.totalorder %s16, 1
    %p186 = scmp.ne.s32.totalorder %s181, %s183
    %p187 = scmp.eq.s32.totalorder %s16, 0
    %p188 = por %p186, %p187
    %p189 = scmp.ne.s32.totalorder %s181, %s183
    %p190 = scmp.eq.s32.totalorder %s21, 1
    %p191 = por %p189, %p190
    %p192 = scmp.ne.s32.totalorder %s183, %s184
    %p193 = scmp.eq.s32.totalorder %s21, 0
    %p194 = por %p192, %p193
    %p195 = scmp.ne.s32.totalorder %s183, %s184
    %p196 = scmp.eq.s32.totalorder %s22, 1
    %p197 = por %p195, %p196
    %p199 = scmp.ne.s32.totalorder %s184, %s198
    %p200 = scmp.eq.s32.totalorder %s22, 0
    %p201 = por %p199, %p200
    %s203 = sadd.s32 %s202, 1
    %p206 = scmp.eq.s32.totalorder %s16, 1
    %p207 = scmp.ne.s32.totalorder %s202, %s204
    %p208 = scmp.eq.s32.totalorder %s16, 0
    %p209 = por %p207, %p208
    %p210 = scmp.ne.s32.totalorder %s202, %s204
    %p211 = scmp.eq.s32.totalorder %s21, 1
    %p212 = por %p210, %p211
    %p213 = scmp.ne.s32.totalorder %s204, %s205
    %p214 = scmp.eq.s32.totalorder %s21, 0
    %p215 = por %p213, %p214
    %p216 = scmp.ne.s32.totalorder %s204, %s205
    %p217 = scmp.eq.s32.totalorder %s22, 1
    %p218 = por %p216, %p217
    %p220 = scmp.ne.s32.totalorder %s205, %s219
    %p221 = scmp.eq.s32.totalorder %s22, 0
    %p222 = por %p220, %p221
    %s224 = sadd.s32 %s223, 1
    %p227 = scmp.eq.s32.totalorder %s16, 1
    %p228 = scmp.ne.s32.totalorder %s223, %s225
    %p229 = scmp.eq.s32.totalorder %s16, 0
    %p230 = por %p228, %p229
    %p231 = scmp.ne.s32.totalorder %s223, %s225
    %p232 = scmp.eq.s32.totalorder %s21, 1
    %p233 = por %p231, %p232
    %p234 = scmp.ne.s32.totalorder %s225, %s226
    %p235 = scmp.eq.s32.totalorder %s21, 0
    %p236 = por %p234, %p235
    %p237 = scmp.ne.s32.totalorder %s225, %s226
    %p238 = scmp.eq.s32.totalorder %s22, 1
    %p239 = por %p237, %p238
    %p241 = scmp.ne.s32.totalorder %s226, %s240
    %p242 = scmp.eq.s32.totalorder %s22, 0
    %p243 = por %p241, %p242
    %s244 = ssub.s32 %s16, %s23
    %p245 = scmp.eq.s32.totalorder %s244, 0
    %s247 = sadd.s32 %s246, 1
    %s248 = scalar_select %p245, %s246, %s247
    %p251 = pneg %p245
    %p252 = scmp.eq.s32.totalorder %s16, 1
    %p253 = por %p251, %p252
    %p254 = scmp.ne.s32.totalorder %s246, %s249
    %p255 = scmp.eq.s32.totalorder %s16, 0
    %p256 = por %p254, %p255
    %p257 = scmp.ne.s32.totalorder %s246, %s249
    %p258 = scmp.eq.s32.totalorder %s21, 1
    %p259 = por %p257, %p258
    %p260 = scmp.ne.s32.totalorder %s249, %s250
    %p261 = scmp.eq.s32.totalorder %s21, 0
    %p262 = por %p260, %p261
    %p263 = scmp.ne.s32.totalorder %s249, %s250
    %p264 = scmp.eq.s32.totalorder %s22, 1
    %p265 = por %p263, %p264
    %p267 = scmp.ne.s32.totalorder %s250, %s266
    %p268 = scmp.eq.s32.totalorder %s22, 0
    %p269 = por %p267, %p268
    %p270 = scmp.le.s32.totalorder 1, %s16
    %p271 = scmp.lt.s32.totalorder %s16, 3
    %p272 = pnand %p270, %p271
    %p273 = pneg %p272
    // Predicated region
    $region9: #{tpu_custom_call.1} parent=5 // pred_check
      _
    $region10: #{tpu_custom_call.1} parent=5 // pred_check_branch
      %275 = sbr.rel (%p272) target = $region12
    $region11: #{tpu_custom_call.1} parent=5 // pred_region
      %s276 = ssub.s32 %s16, 1
      // Predicated region
      $region13: #{tpu_custom_call.1} parent=11 // pred_check
        %p277 = pneg %p89
      $region14: #{tpu_custom_call.1} parent=11 // pred_check_branch
        %279 = sbr.rel (%p277) target = $region16
      $region15: #{tpu_custom_call.1} parent=11 // pred_region
        _
      $region16: #{tpu_custom_call.1} parent=11 // pred_fallthru
        _
      // Predicated region
      $region17: #{tpu_custom_call.1} parent=11 // pred_check
        %p280 = pneg %p110
      $region18: #{tpu_custom_call.1} parent=11 // pred_check_branch
        %282 = sbr.rel (%p280) target = $region20
      $region19: #{tpu_custom_call.1} parent=11 // pred_region
        _
      $region20: #{tpu_custom_call.1} parent=11 // pred_fallthru
        _
      // Predicated region
      $region21: #{tpu_custom_call.1} parent=11 // pred_check
        %p283 = pneg %p131
      $region22: #{tpu_custom_call.1} parent=11 // pred_check_branch
        %285 = sbr.rel (%p283) target = $region24
      $region23: #{tpu_custom_call.1} parent=11 // pred_region
        _
      $region24: #{tpu_custom_call.1} parent=11 // pred_fallthru
        _
      // Predicated region
      $region25: #{tpu_custom_call.1} parent=11 // pred_check
        %p286 = pneg %p152
      $region26: #{tpu_custom_call.1} parent=11 // pred_check_branch
        %288 = sbr.rel (%p286) target = $region28
      $region27: #{tpu_custom_call.1} parent=11 // pred_region
        _
      $region28: #{tpu_custom_call.1} parent=11 // pred_fallthru
        _
      // Predicated region
      $region29: #{tpu_custom_call.1} parent=11 // pred_check
        %p289 = pneg %p173
      $region30: #{tpu_custom_call.1} parent=11 // pred_check_branch
        %291 = sbr.rel (%p289) target = $region32
      $region31: #{tpu_custom_call.1} parent=11 // pred_region
        _
      $region32: #{tpu_custom_call.1} parent=11 // pred_fallthru
        _
      // Predicated region
      $region33: #{tpu_custom_call.1} parent=11 // pred_check
        %p292 = pneg %p194
      $region34: #{tpu_custom_call.1} parent=11 // pred_check_branch
        %294 = sbr.rel (%p292) target = $region36
      $region35: #{tpu_custom_call.1} parent=11 // pred_region
        _
      $region36: #{tpu_custom_call.1} parent=11 // pred_fallthru
        _
      // Predicated region
      $region37: #{tpu_custom_call.1} parent=11 // pred_check
        %p295 = pneg %p215
      $region38: #{tpu_custom_call.1} parent=11 // pred_check_branch
        %297 = sbr.rel (%p295) target = $region40
      $region39: #{tpu_custom_call.1} parent=11 // pred_region
        _
      $region40: #{tpu_custom_call.1} parent=11 // pred_fallthru
        _
      // Predicated region
      $region41: #{tpu_custom_call.1} parent=11 // pred_check
        %p298 = pneg %p236
      $region42: #{tpu_custom_call.1} parent=11 // pred_check_branch
        %300 = sbr.rel (%p298) target = $region44
      $region43: #{tpu_custom_call.1} parent=11 // pred_region
        _
      $region44: #{tpu_custom_call.1} parent=11 // pred_fallthru
        _
    $region12: #{tpu_custom_call.1} parent=5 // pred_fallthru
      _
    %p301 = scmp.lt.s32.totalorder %s16, 2
    // Predicated region
    $region45: #{tpu_custom_call.1} parent=5 // pred_check
      %p302 = pneg %p301
    $region46: #{tpu_custom_call.1} parent=5 // pred_check_branch
      %304 = sbr.rel (%p302) target = $region48
    $region47: #{tpu_custom_call.1} parent=5 // pred_region
      // Predicated region
      $region49: #{tpu_custom_call.1} parent=47 // pred_check
        %p305 = pneg %p36
      $region50: #{tpu_custom_call.1} parent=47 // pred_check_branch
        %307 = sbr.rel (%p305) target = $region52
      $region51: #{tpu_custom_call.1} parent=47 // pred_region
        %s308 = smul.u32 19, %s16
        %p309 = scmp.lt.s32.totalorder %s308, 37
        %s310 = scalar_select %p309, %s308, 37
        %s311 = smul.addr %s310, 8
        %s312 = scalar_lea.vmem %s0, %s311
        %s313 = smul.u32 19, %s16
      $region52: #{tpu_custom_call.1} parent=47 // pred_fallthru
        _
      // Predicated region
      $region53: #{tpu_custom_call.1} parent=47 // pred_check
        %p314 = pneg %p62
      $region54: #{tpu_custom_call.1} parent=47 // pred_check_branch
        %316 = sbr.rel (%p314) target = $region56
      $region55: #{tpu_custom_call.1} parent=47 // pred_region
        %s317 = smul.u32 19, %s16
        %p318 = scmp.lt.s32.totalorder %s317, 37
        %s319 = scalar_select %p318, %s317, 37
        %s320 = smul.addr %s319, 8
        %s321 = scalar_lea.vmem %s1, %s320
        %s322 = smul.u32 19, %s16
      $region56: #{tpu_custom_call.1} parent=47 // pred_fallthru
        _
    $region48: #{tpu_custom_call.1} parent=5 // pred_fallthru
      _
    %p323 = scmp.le.s32.totalorder 1, %s16
    %p324 = scmp.lt.s32.totalorder %s16, 3
    %p325 = pnand %p323, %p324
    %p326 = pneg %p325
    // Predicated region
    $region57: #{tpu_custom_call.1} parent=5 // pred_check
      _
    $region58: #{tpu_custom_call.1} parent=5 // pred_check_branch
      %328 = sbr.rel (%p325) target = $region60
    $region59: #{tpu_custom_call.1} parent=5 // pred_region
      %s329 = ssub.s32 %s16, 1
      %s330 = smul.u32 19, %s21
      %p331 = scmp.lt.s32.totalorder %s330, 37
      %s332 = scalar_select %p331, %s330, 37
      %s333 = smul.addr %s332, 8
      %s334 = scalar_lea.vmem %s0, %s333
      %p335 = pneg %p42
      %p336 = pneg %p39
      %s337 = smul.u32 19, %s21
      %p338 = scmp.lt.s32.totalorder %s337, 37
      %s339 = scalar_select %p338, %s337, 37
      %s340 = smul.addr %s339, 8
      %s341 = scalar_lea.vmem %s1, %s340
      %p342 = pneg %p68
      %p343 = pneg %p65
      %p344 = pneg %p89
      %p345 = pneg %p86
      %p346 = pneg %p110
      %p347 = pneg %p107
      %p348 = pneg %p131
      %p349 = pneg %p128
      %p350 = pneg %p152
      %p351 = pneg %p149
      %p352 = pneg %p173
      %p353 = pneg %p170
      %p354 = pneg %p194
      %p355 = pneg %p191
      %p356 = pneg %p215
      %p357 = pneg %p212
      %p358 = pneg %p236
      %p359 = pneg %p233
      %p360 = pneg %p262
      %p361 = pneg %p259
      %s362 = smul.u32 19, %s21
      %p363 = scmp.lt.s32.totalorder %s362, 37
      %s364 = scalar_select %p363, %s362, 37
      %s365 = smul.addr %s364, 8
      %s366 = scalar_lea.vmem %s10, %s365
      %s367 = smul.u32 19, %s21
      %p368 = scmp.lt.s32.totalorder %s367, 37
      %s369 = scalar_select %p368, %s367, 37
      %s370 = smul.addr %s369, 8
      %s371 = scalar_lea.vmem %s0, %s370
      %s372 = smul.u32 19, %s21
      %s373 = smul.u32 19, %s21
      %p374 = scmp.lt.s32.totalorder %s373, 37
      %s375 = scalar_select %p374, %s373, 37
      %s376 = smul.addr %s375, 8
      %s377 = scalar_lea.vmem %s1, %s376
      %s378 = smul.u32 19, %s21
      %s379 = smul.u32 19, %s21
      %p380 = scmp.lt.s32.totalorder %s379, 37
      %s381 = scalar_select %p380, %s379, 37
      %s382 = smul.addr %s381, 8
      %s383 = scalar_lea.vmem %s10, %s382
      %s384 = smul.u32 19, %s21
      %v385 = vld [vmem:[%s371] sm:$0xff]
      %v386 = vld [vmem:[%s371 + $0x8] sm:$0xff]
      %v387 = vld [vmem:[%s371 + $0x10] sm:$0xff]
      %v388 = vld [vmem:[%s371 + $0x18] sm:$0xff]
      %v389 = vld [vmem:[%s371 + $0x20] sm:$0xff]
      %v390 = vld [vmem:[%s371 + $0x28] sm:$0xff]
      %v391 = vld [vmem:[%s371 + $0x30] sm:$0xff]
      %v392 = vld [vmem:[%s371 + $0x38] sm:$0xff]
      %v393 = vld [vmem:[%s371 + $0x40] sm:$0xff]
      %v394 = vld [vmem:[%s371 + $0x48] sm:$0xff]
      %v395 = vld [vmem:[%s371 + $0x50] sm:$0xff]
      %v396 = vld [vmem:[%s371 + $0x58] sm:$0xff]
      %v397 = vld [vmem:[%s371 + $0x60] sm:$0xff]
      %v398 = vld [vmem:[%s371 + $0x68] sm:$0xff]
      %v399 = vld [vmem:[%s371 + $0x70] sm:$0xff]
      %v400 = vld [vmem:[%s371 + $0x78] sm:$0xff]
      %v401 = vld [vmem:[%s371 + $0x80] sm:$0xff]
      %v402 = vld [vmem:[%s371 + $0x88] sm:$0xff]
      %v403 = vld [vmem:[%s371 + $0x90] sm:$0xff]
      %v404 = vld [vmem:[%s377] sm:$0xff]
      %v405 = vld [vmem:[%s377 + $0x8] sm:$0xff]
      %v406 = vld [vmem:[%s377 + $0x10] sm:$0xff]
      %v407 = vld [vmem:[%s377 + $0x18] sm:$0xff]
      %v408 = vld [vmem:[%s377 + $0x20] sm:$0xff]
      %v409 = vld [vmem:[%s377 + $0x28] sm:$0xff]
      %v410 = vld [vmem:[%s377 + $0x30] sm:$0xff]
      %v411 = vld [vmem:[%s377 + $0x38] sm:$0xff]
      %v412 = vld [vmem:[%s377 + $0x40] sm:$0xff]
      %v413 = vld [vmem:[%s377 + $0x48] sm:$0xff]
      %v414 = vld [vmem:[%s377 + $0x50] sm:$0xff]
      %v415 = vld [vmem:[%s377 + $0x58] sm:$0xff]
      %v416 = vld [vmem:[%s377 + $0x60] sm:$0xff]
      %v417 = vld [vmem:[%s377 + $0x68] sm:$0xff]
      %v418 = vld [vmem:[%s377 + $0x70] sm:$0xff]
      %v419 = vld [vmem:[%s377 + $0x78] sm:$0xff]
      %v420 = vld [vmem:[%s377 + $0x80] sm:$0xff]
      %v421 = vld [vmem:[%s377 + $0x88] sm:$0xff]
      %v422 = vld [vmem:[%s377 + $0x90] sm:$0xff]
      %442 = vrot.lane.b32.xlu0 %v404, 32
      %v443 = vpop.permute.xlu0 %442
      %444 = vrot.lane.b32.xlu0 %v405, 32
      %v445 = vpop.permute.xlu0 %444
      %446 = vrot.lane.b32.xlu0 %v406, 32
      %v447 = vpop.permute.xlu0 %446
      %448 = vrot.lane.b32.xlu0 %v407, 32
      %v449 = vpop.permute.xlu0 %448
      %450 = vrot.lane.b32.xlu0 %v408, 32
      %v451 = vpop.permute.xlu0 %450
      %452 = vrot.lane.b32.xlu0 %v409, 32
      %v453 = vpop.permute.xlu0 %452
      %454 = vrot.lane.b32.xlu0 %v410, 32
      %v455 = vpop.permute.xlu0 %454
      %456 = vrot.lane.b32.xlu0 %v411, 32
      %v457 = vpop.permute.xlu0 %456
      %458 = vrot.lane.b32.xlu0 %v412, 32
      %v459 = vpop.permute.xlu0 %458
      %460 = vrot.lane.b32.xlu0 %v413, 32
      %v461 = vpop.permute.xlu0 %460
      %462 = vrot.lane.b32.xlu0 %v414, 32
      %v463 = vpop.permute.xlu0 %462
      %464 = vrot.lane.b32.xlu0 %v415, 32
      %v465 = vpop.permute.xlu0 %464
      %466 = vrot.lane.b32.xlu0 %v416, 32
      %v467 = vpop.permute.xlu0 %466
      %468 = vrot.lane.b32.xlu0 %v417, 32
      %v469 = vpop.permute.xlu0 %468
      %470 = vrot.lane.b32.xlu0 %v418, 32
      %v471 = vpop.permute.xlu0 %470
      %472 = vrot.lane.b32.xlu0 %v419, 32
      %v473 = vpop.permute.xlu0 %472
      %474 = vrot.lane.b32.xlu0 %v420, 32
      %v475 = vpop.permute.xlu0 %474
      %476 = vrot.lane.b32.xlu0 %v421, 32
      %v477 = vpop.permute.xlu0 %476
      %478 = vrot.lane.b32.xlu0 %v422, 32
      %v479 = vpop.permute.xlu0 %478
      %vm499 = vcmask 261120
      %v500 = vsel %vm499, %v385, %v443
      %v501 = vsel %vm499, %v386, %v445
      %v502 = vsel %vm499, %v387, %v447
      %v503 = vsel %vm499, %v388, %v449
      %v504 = vsel %vm499, %v389, %v451
      %v505 = vsel %vm499, %v390, %v453
      %v506 = vsel %vm499, %v391, %v455
      %v507 = vsel %vm499, %v392, %v457
      %v508 = vsel %vm499, %v393, %v459
      %v509 = vsel %vm499, %v394, %v461
      %v510 = vsel %vm499, %v395, %v463
      %v511 = vsel %vm499, %v396, %v465
      %v512 = vsel %vm499, %v397, %v467
      %v513 = vsel %vm499, %v398, %v469
      %v514 = vsel %vm499, %v399, %v471
      %v515 = vsel %vm499, %v400, %v473
      %v516 = vsel %vm499, %v401, %v475
      %v517 = vsel %vm499, %v402, %v477
      %v518 = vsel %vm499, %v403, %v479
      %v519 = vld [vmem:[%s2] sm:$0xff]
      %v520 = vld [vmem:[%s2 + $0x8] sm:$0xff]
      %v521 = vld [vmem:[%s2 + $0x10] sm:$0xff]
      %v522 = vld [vmem:[%s2 + $0x18] sm:$0xff]
      %v523 = vld [vmem:[%s2 + $0x20] sm:$0xff]
      %v524 = vld [vmem:[%s2 + $0x28] sm:$0xff]
      %v525 = vld [vmem:[%s2 + $0x30] sm:$0xff]
      %v526 = vld [vmem:[%s2 + $0x38] sm:$0xff]
      %v527 = vld [vmem:[%s2 + $0x40] sm:$0xff]
      %v528 = vld [vmem:[%s2 + $0x48] sm:$0xff]
      %v529 = vld [vmem:[%s2 + $0x50] sm:$0xff]
      %v530 = vld [vmem:[%s2 + $0x58] sm:$0xff]
      %v531 = vld [vmem:[%s2 + $0x60] sm:$0xff]
      %v532 = vld [vmem:[%s2 + $0x68] sm:$0xff]
      %v533 = vld [vmem:[%s2 + $0x70] sm:$0xff]
      %v534 = vld [vmem:[%s2 + $0x78] sm:$0xff]
      %v535 = vld [vmem:[%s3] sm:$0x3]
      %v537 = vlaneseq
      %v538 = vshrl.u32 %v537, 7
      %v539 = vsub.s32 0, %v538
      %v540 = vrot.slane %v535, %v539
      %v541 = vlaneseq
      %v542 = vshrl.u32 %v541, 7
      %v543 = vsub.s32 1, %v542
      %v544 = vrot.slane %v535, %v543
      %vm547 = vcmask 523264
      %v549 = vsel %vm547, %v500, 0
      %v552 = vsel %vm547, %v501, 0
      %v555 = vsel %vm547, %v502, 0
      %v558 = vsel %vm547, %v503, 0
      %v561 = vsel %vm547, %v504, 0
      %v564 = vsel %vm547, %v505, 0
      %v567 = vsel %vm547, %v506, 0
      %v570 = vsel %vm547, %v507, 0
      %v573 = vsel %vm547, %v508, 0
      %v576 = vsel %vm547, %v509, 0
      %v579 = vsel %vm547, %v510, 0
      %v582 = vsel %vm547, %v511, 0
      %v585 = vsel %vm547, %v512, 0
      %v588 = vsel %vm547, %v513, 0
      %v591 = vsel %vm547, %v514, 0
      %v594 = vsel %vm547, %v515, 0
      %v597 = vsel %vm547, %v516, 0
      %v600 = vsel %vm547, %v517, 0
      %v603 = vsel %vm547, %v518, 0
      %605 = vmatprep.subr.mxu0 %v520
      %606 = vmatpush1.msra.mxu0 %v519
      %607 = vmatprep.subr.mxu0 %v522
      %608 = vmatpush1.msra.mxu0 %v521
      %609 = vmatprep.subr.mxu0 %v524
      %610 = vmatpush1.msra.mxu0 %v523
      %611 = vmatprep.subr.mxu0 %v526
      %612 = vmatpush1.msra.mxu0 %v525
      %613 = vmatprep.subr.mxu0 %v528
      %614 = vmatpush1.msra.mxu0 %v527
      %615 = vmatprep.subr.mxu0 %v530
      %616 = vmatpush1.msra.mxu0 %v529
      %617 = vmatprep.subr.mxu0 %v532
      %618 = vmatpush1.msra.mxu0 %v531
      %619 = vmatprep.subr.mxu0 %v534
      %620 = vmatpush1.msra.mxu0 %v533
      %621 = vmatprep.subr.mxu0 0.0
      %622 = vmatpush1.msra.mxu0 0.0
      %623 = vmatprep.subr.mxu0 0.0
      %624 = vmatpush1.msra.mxu0 0.0
      %625 = vmatprep.subr.mxu0 0.0
      %626 = vmatpush1.msra.mxu0 0.0
      %627 = vmatprep.subr.mxu0 0.0
      %628 = vmatpush1.msra.mxu0 0.0
      %629 = vmatprep.subr.mxu0 0.0
      %630 = vmatpush1.msra.mxu0 0.0
      %631 = vmatprep.subr.mxu0 0.0
      %632 = vmatpush1.msra.mxu0 0.0
      %633 = vmatprep.subr.mxu0 0.0
      %634 = vmatpush1.msra.mxu0 0.0
      %635 = vmatprep.subr.mxu0 0.0
      %636 = vmatpush1.msra.mxu0 0.0
      %637 = vmatprep.subr.mxu0 0.0
      %638 = vmatpush1.msra.mxu0 0.0
      %639 = vmatprep.subr.mxu0 0.0
      %640 = vmatpush1.msra.mxu0 0.0
      %641 = vmatprep.subr.mxu0 0.0
      %642 = vmatpush1.msra.mxu0 0.0
      %643 = vmatprep.subr.mxu0 0.0
      %644 = vmatpush1.msra.mxu0 0.0
      %645 = vmatprep.subr.mxu0 0.0
      %646 = vmatpush1.msra.mxu0 0.0
      %647 = vmatprep.subr.mxu0 0.0
      %648 = vmatpush1.msra.mxu0 0.0
      %649 = vmatprep.subr.mxu0 0.0
      %650 = vmatpush1.msra.mxu0 0.0
      %651 = vmatprep.subr.mxu0 0.0
      %652 = vmatpush1.msra.mxu0 0.0
      %653 = vmatprep.subr.mxu0 0.0
      %654 = vmatpush1.msra.mxu0 0.0
      %655 = vmatprep.subr.mxu0 0.0
      %656 = vmatpush1.msra.mxu0 0.0
      %657 = vmatprep.subr.mxu0 0.0
      %658 = vmatpush1.msra.mxu0 0.0
      %659 = vmatprep.subr.mxu0 0.0
      %660 = vmatpush1.msra.mxu0 0.0
      %661 = vmatprep.subr.mxu0 0.0
      %662 = vmatpush1.msra.mxu0 0.0
      %663 = vmatprep.subr.mxu0 0.0
      %664 = vmatpush1.msra.mxu0 0.0
      %665 = vmatprep.subr.mxu0 0.0
      %666 = vmatpush1.msra.mxu0 0.0
      %667 = vmatprep.subr.mxu0 0.0
      %668 = vmatpush1.msra.mxu0 0.0
      %669 = vmatprep.mubr.f32.mxu0 0.0
      %670 = vmatmul.mubr.f32.gmra.mrb[0].mxu0 %v549
      %v671 = vpop.f32.mrb[0].mxu0
      %v672 = vadd.f32 %v540, %v671
      %v673 = vpop.f32.mrb[0].mxu0
      %v674 = vadd.f32 %v544, %v673
      %675 = vmatprep.mubr.f32.mxu0 0.0
      %676 = vmatmul.mubr.f32.gmra.mrb[0].mxu0 %v552
      %v677 = vpop.f32.mrb[0].mxu0
      %v678 = vadd.f32 %v540, %v677
      %v679 = vpop.f32.mrb[0].mxu0
      %v680 = vadd.f32 %v544, %v679
      %681 = vmatprep.mubr.f32.mxu0 0.0
      %682 = vmatmul.mubr.f32.gmra.mrb[0].mxu0 %v555
      %v683 = vpop.f32.mrb[0].mxu0
      %v684 = vadd.f32 %v540, %v683
      %v685 = vpop.f32.mrb[0].mxu0
      %v686 = vadd.f32 %v544, %v685
      %687 = vmatprep.mubr.f32.mxu0 0.0
      %688 = vmatmul.mubr.f32.gmra.mrb[0].mxu0 %v558
      %v689 = vpop.f32.mrb[0].mxu0
      %v690 = vadd.f32 %v540, %v689
      %v691 = vpop.f32.mrb[0].mxu0
      %v692 = vadd.f32 %v544, %v691
      %693 = vmatprep.mubr.f32.mxu0 0.0
      %694 = vmatmul.mubr.f32.gmra.mrb[0].mxu0 %v561
      %v695 = vpop.f32.mrb[0].mxu0
      %v696 = vadd.f32 %v540, %v695
      %v697 = vpop.f32.mrb[0].mxu0
      %v698 = vadd.f32 %v544, %v697
      %699 = vmatprep.mubr.f32.mxu0 0.0
      %700 = vmatmul.mubr.f32.gmra.mrb[0].mxu0 %v564
      %v701 = vpop.f32.mrb[0].mxu0
      %v702 = vadd.f32 %v540, %v701
      %v703 = vpop.f32.mrb[0].mxu0
      %v704 = vadd.f32 %v544, %v703
      %705 = vmatprep.mubr.f32.mxu0 0.0
      %706 = vmatmul.mubr.f32.gmra.mrb[0].mxu0 %v567
      %v707 = vpop.f32.mrb[0].mxu0
      %v708 = vadd.f32 %v540, %v707
      %v709 = vpop.f32.mrb[0].mxu0
      %v710 = vadd.f32 %v544, %v709
      %711 = vmatprep.mubr.f32.mxu0 0.0
      %712 = vmatmul.mubr.f32.gmra.mrb[0].mxu0 %v570
      %v713 = vpop.f32.mrb[0].mxu0
      %v714 = vadd.f32 %v540, %v713
      %v715 = vpop.f32.mrb[0].mxu0
      %v716 = vadd.f32 %v544, %v715
      %717 = vmatprep.mubr.f32.mxu0 0.0
      %718 = vmatmul.mubr.f32.gmra.mrb[0].mxu0 %v573
      %v719 = vpop.f32.mrb[0].mxu0
      %v720 = vadd.f32 %v540, %v719
      %v721 = vpop.f32.mrb[0].mxu0
      %v722 = vadd.f32 %v544, %v721
      %723 = vmatprep.mubr.f32.mxu0 0.0
      %724 = vmatmul.mubr.f32.gmra.mrb[0].mxu0 %v576
      %v725 = vpop.f32.mrb[0].mxu0
      %v726 = vadd.f32 %v540, %v725
      %v727 = vpop.f32.mrb[0].mxu0
      %v728 = vadd.f32 %v544, %v727
      %729 = vmatprep.mubr.f32.mxu0 0.0
      %730 = vmatmul.mubr.f32.gmra.mrb[0].mxu0 %v579
      %v731 = vpop.f32.mrb[0].mxu0
      %v732 = vadd.f32 %v540, %v731
      %v733 = vpop.f32.mrb[0].mxu0
      %v734 = vadd.f32 %v544, %v733
      %735 = vmatprep.mubr.f32.mxu0 0.0
      %736 = vmatmul.mubr.f32.gmra.mrb[0].mxu0 %v582
      %v737 = vpop.f32.mrb[0].mxu0
      %v738 = vadd.f32 %v540, %v737
      %v739 = vpop.f32.mrb[0].mxu0
      %v740 = vadd.f32 %v544, %v739
      %741 = vmatprep.mubr.f32.mxu0 0.0
      %742 = vmatmul.mubr.f32.gmra.mrb[0].mxu0 %v585
      %v743 = vpop.f32.mrb[0].mxu0
      %v744 = vadd.f32 %v540, %v743
      %v745 = vpop.f32.mrb[0].mxu0
      %v746 = vadd.f32 %v544, %v745
      %747 = vmatprep.mubr.f32.mxu0 0.0
      %748 = vmatmul.mubr.f32.gmra.mrb[0].mxu0 %v588
      %v749 = vpop.f32.mrb[0].mxu0
      %v750 = vadd.f32 %v540, %v749
      %v751 = vpop.f32.mrb[0].mxu0
      %v752 = vadd.f32 %v544, %v751
      %753 = vmatprep.mubr.f32.mxu0 0.0
      %754 = vmatmul.mubr.f32.gmra.mrb[0].mxu0 %v591
      %v755 = vpop.f32.mrb[0].mxu0
      %v756 = vadd.f32 %v540, %v755
      %v757 = vpop.f32.mrb[0].mxu0
      %v758 = vadd.f32 %v544, %v757
      %759 = vmatprep.mubr.f32.mxu0 0.0
      %760 = vmatmul.mubr.f32.gmra.mrb[0].mxu0 %v594
      %v761 = vpop.f32.mrb[0].mxu0
      %v762 = vadd.f32 %v540, %v761
      %v763 = vpop.f32.mrb[0].mxu0
      %v764 = vadd.f32 %v544, %v763
      %765 = vmatprep.mubr.f32.mxu0 0.0
      %766 = vmatmul.mubr.f32.gmra.mrb[0].mxu0 %v597
      %v767 = vpop.f32.mrb[0].mxu0
      %v768 = vadd.f32 %v540, %v767
      %v769 = vpop.f32.mrb[0].mxu0
      %v770 = vadd.f32 %v544, %v769
      %771 = vmatprep.mubr.f32.mxu0 0.0
      %772 = vmatmul.mubr.f32.gmra.mrb[0].mxu0 %v600
      %v773 = vpop.f32.mrb[0].mxu0
      %v774 = vadd.f32 %v540, %v773
      %v775 = vpop.f32.mrb[0].mxu0
      %v776 = vadd.f32 %v544, %v775
      %777 = vmatprep.mubr.f32.mxu0 0.0
      %778 = vmatmul.mubr.f32.gmra.mrb[0].mxu0 %v603
      %v779 = vpop.f32.mrb[0].mxu0
      %v780 = vadd.f32 %v540, %v779
      %v781 = vpop.f32.mrb[0].mxu0
      %v782 = vadd.f32 %v544, %v781
      %783 = vdwg.mxu0
      %v784 = vtanh.pop %v672
      %v785 = vtanh.pop %v674
      %v786 = vtanh.pop %v678
      %v787 = vtanh.pop %v680
      %v788 = vtanh.pop %v684
      %v789 = vtanh.pop %v686
      %v790 = vtanh.pop %v690
      %v791 = vtanh.pop %v692
      %v792 = vtanh.pop %v696
      %v793 = vtanh.pop %v698
      %v794 = vtanh.pop %v702
      %v795 = vtanh.pop %v704
      %v796 = vtanh.pop %v708
      %v797 = vtanh.pop %v710
      %v798 = vtanh.pop %v714
      %v799 = vtanh.pop %v716
      %v800 = vtanh.pop %v720
      %v801 = vtanh.pop %v722
      %v802 = vtanh.pop %v726
      %v803 = vtanh.pop %v728
      %v804 = vtanh.pop %v732
      %v805 = vtanh.pop %v734
      %v806 = vtanh.pop %v738
      %v807 = vtanh.pop %v740
      %v808 = vtanh.pop %v744
      %v809 = vtanh.pop %v746
      %v810 = vtanh.pop %v750
      %v811 = vtanh.pop %v752
      %v812 = vtanh.pop %v756
      %v813 = vtanh.pop %v758
      %v814 = vtanh.pop %v762
      %v815 = vtanh.pop %v764
      %v816 = vtanh.pop %v768
      %v817 = vtanh.pop %v770
      %v818 = vtanh.pop %v774
      %v819 = vtanh.pop %v776
      %v820 = vtanh.pop %v780
      %v821 = vtanh.pop %v782
      %v822 = vld [vmem:[%s4] sm:$0xff]
      %v823 = vld [vmem:[%s4 + $0x8] sm:$0xff]
      %v824 = vld [vmem:[%s4 + $0x10] sm:$0xff]
      %v825 = vld [vmem:[%s4 + $0x18] sm:$0xff]
      %v826 = vld [vmem:[%s4 + $0x20] sm:$0xff]
      %v827 = vld [vmem:[%s4 + $0x28] sm:$0xff]
      %v828 = vld [vmem:[%s4 + $0x30] sm:$0xff]
      %v829 = vld [vmem:[%s4 + $0x38] sm:$0xff]
      %v830 = vld [vmem:[%s4 + $0x40] sm:$0xff]
      %v831 = vld [vmem:[%s4 + $0x48] sm:$0xff]
      %v832 = vld [vmem:[%s4 + $0x50] sm:$0xff]
      %v833 = vld [vmem:[%s4 + $0x58] sm:$0xff]
      %v834 = vld [vmem:[%s4 + $0x60] sm:$0xff]
      %v835 = vld [vmem:[%s4 + $0x68] sm:$0xff]
      %v836 = vld [vmem:[%s4 + $0x70] sm:$0xff]
      %v837 = vld [vmem:[%s4 + $0x78] sm:$0xff]
      %v838 = vld [vmem:[%s4 + $0x80] sm:$0xff]
      %v839 = vld [vmem:[%s4 + $0x88] sm:$0xff]
      %v840 = vld [vmem:[%s4 + $0x90] sm:$0xff]
      %v841 = vld [vmem:[%s4 + $0x98] sm:$0xff]
      %v842 = vld [vmem:[%s4 + $0xa0] sm:$0xff]
      %v843 = vld [vmem:[%s4 + $0xa8] sm:$0xff]
      %v844 = vld [vmem:[%s4 + $0xb0] sm:$0xff]
      %v845 = vld [vmem:[%s4 + $0xb8] sm:$0xff]
      %v846 = vld [vmem:[%s4 + $0xc0] sm:$0xff]
      %v847 = vld [vmem:[%s4 + $0xc8] sm:$0xff]
      %v848 = vld [vmem:[%s4 + $0xd0] sm:$0xff]
      %v849 = vld [vmem:[%s4 + $0xd8] sm:$0xff]
      %v850 = vld [vmem:[%s4 + $0xe0] sm:$0xff]
      %v851 = vld [vmem:[%s4 + $0xe8] sm:$0xff]
      %v852 = vld [vmem:[%s4 + $0xf0] sm:$0xff]
      %v853 = vld [vmem:[%s4 + $0xf8] sm:$0xff]
      %v854 = vld [vmem:[%s5] sm:$0x1]
      %v856 = vlaneseq
      %v857 = vshrl.u32 %v856, 7
      %v858 = vsub.s32 0, %v857
      %v859 = vrot.slane %v854, %v858
      %861 = vmatprep.subr.mxu0 0.0
      %862 = vmatpush1.msra.mxu0 %v822
      %863 = vmatprep.subr.mxu0 0.0
      %864 = vmatpush1.msra.mxu0 %v823
      %865 = vmatprep.subr.mxu0 0.0
      %866 = vmatpush1.msra.mxu0 %v824
      %867 = vmatprep.subr.mxu0 0.0
      %868 = vmatpush1.msra.mxu0 %v825
      %869 = vmatprep.subr.mxu0 0.0
      %870 = vmatpush1.msra.mxu0 %v826
      %871 = vmatprep.subr.mxu0 0.0
      %872 = vmatpush1.msra.mxu0 %v827
      %873 = vmatprep.subr.mxu0 0.0
      %874 = vmatpush1.msra.mxu0 %v828
      %875 = vmatprep.subr.mxu0 0.0
      %876 = vmatpush1.msra.mxu0 %v829
      %877 = vmatprep.subr.mxu0 0.0
      %878 = vmatpush1.msra.mxu0 %v830
      %879 = vmatprep.subr.mxu0 0.0
      %880 = vmatpush1.msra.mxu0 %v831
      %881 = vmatprep.subr.mxu0 0.0
      %882 = vmatpush1.msra.mxu0 %v832
      %883 = vmatprep.subr.mxu0 0.0
      %884 = vmatpush1.msra.mxu0 %v833
      %885 = vmatprep.subr.mxu0 0.0
      %886 = vmatpush1.msra.mxu0 %v834
      %887 = vmatprep.subr.mxu0 0.0
      %888 = vmatpush1.msra.mxu0 %v835
      %889 = vmatprep.subr.mxu0 0.0
      %890 = vmatpush1.msra.mxu0 %v836
      %891 = vmatprep.subr.mxu0 0.0
      %892 = vmatpush1.msra.mxu0 %v837
      %893 = vmatprep.subr.mxu0 0.0
      %894 = vmatpush1.msra.mxu0 %v838
      %895 = vmatprep.subr.mxu0 0.0
      %896 = vmatpush1.msra.mxu0 %v839
      %897 = vmatprep.subr.mxu0 0.0
      %898 = vmatpush1.msra.mxu0 %v840
      %899 = vmatprep.subr.mxu0 0.0
      %900 = vmatpush1.msra.mxu0 %v841
      %901 = vmatprep.subr.mxu0 0.0
      %902 = vmatpush1.msra.mxu0 %v842
      %903 = vmatprep.subr.mxu0 0.0
      %904 = vmatpush1.msra.mxu0 %v843
      %905 = vmatprep.subr.mxu0 0.0
      %906 = vmatpush1.msra.mxu0 %v844
      %907 = vmatprep.subr.mxu0 0.0
      %908 = vmatpush1.msra.mxu0 %v845
      %909 = vmatprep.subr.mxu0 0.0
      %910 = vmatpush1.msra.mxu0 %v846
      %911 = vmatprep.subr.mxu0 0.0
      %912 = vmatpush1.msra.mxu0 %v847
      %913 = vmatprep.subr.mxu0 0.0
      %914 = vmatpush1.msra.mxu0 %v848
      %915 = vmatprep.subr.mxu0 0.0
      %916 = vmatpush1.msra.mxu0 %v849
      %917 = vmatprep.subr.mxu0 0.0
      %918 = vmatpush1.msra.mxu0 %v850
      %919 = vmatprep.subr.mxu0 0.0
      %920 = vmatpush1.msra.mxu0 %v851
      %921 = vmatprep.subr.mxu0 0.0
      %922 = vmatpush1.msra.mxu0 %v852
      %923 = vmatprep.subr.mxu0 0.0
      %924 = vmatpush1.msra.mxu0 %v853
      %925 = vmatprep.mubr.f32.mxu0 %v785
      %926 = vmatmul.mubr.f32.gmra.mrb[0].mxu0 %v784
      %v927 = vpop.f32.mrb[0].mxu0
      %v928 = vadd.f32 %v859, %v927
      %v929 = vpop.f32.mrb[0].mxu0
      %930 = vmatprep.mubr.f32.mxu0 %v787
      %931 = vmatmul.mubr.f32.gmra.mrb[0].mxu0 %v786
      %v932 = vpop.f32.mrb[0].mxu0
      %v933 = vadd.f32 %v859, %v932
      %v934 = vpop.f32.mrb[0].mxu0
      %935 = vmatprep.mubr.f32.mxu0 %v789
      %936 = vmatmul.mubr.f32.gmra.mrb[0].mxu0 %v788
      %v937 = vpop.f32.mrb[0].mxu0
      %v938 = vadd.f32 %v859, %v937
      %v939 = vpop.f32.mrb[0].mxu0
      %940 = vmatprep.mubr.f32.mxu0 %v791
      %941 = vmatmul.mubr.f32.gmra.mrb[0].mxu0 %v790
      %v942 = vpop.f32.mrb[0].mxu0
      %v943 = vadd.f32 %v859, %v942
      %v944 = vpop.f32.mrb[0].mxu0
      %945 = vmatprep.mubr.f32.mxu0 %v793
      %946 = vmatmul.mubr.f32.gmra.mrb[0].mxu0 %v792
      %v947 = vpop.f32.mrb[0].mxu0
      %v948 = vadd.f32 %v859, %v947
      %v949 = vpop.f32.mrb[0].mxu0
      %950 = vmatprep.mubr.f32.mxu0 %v795
      %951 = vmatmul.mubr.f32.gmra.mrb[0].mxu0 %v794
      %v952 = vpop.f32.mrb[0].mxu0
      %v953 = vadd.f32 %v859, %v952
      %v954 = vpop.f32.mrb[0].mxu0
      %955 = vmatprep.mubr.f32.mxu0 %v797
      %956 = vmatmul.mubr.f32.gmra.mrb[0].mxu0 %v796
      %v957 = vpop.f32.mrb[0].mxu0
      %v958 = vadd.f32 %v859, %v957
      %v959 = vpop.f32.mrb[0].mxu0
      %960 = vmatprep.mubr.f32.mxu0 %v799
      %961 = vmatmul.mubr.f32.gmra.mrb[0].mxu0 %v798
      %v962 = vpop.f32.mrb[0].mxu0
      %v963 = vadd.f32 %v859, %v962
      %v964 = vpop.f32.mrb[0].mxu0
      %965 = vmatprep.mubr.f32.mxu0 %v801
      %966 = vmatmul.mubr.f32.gmra.mrb[0].mxu0 %v800
      %v967 = vpop.f32.mrb[0].mxu0
      %v968 = vadd.f32 %v859, %v967
      %v969 = vpop.f32.mrb[0].mxu0
      %970 = vmatprep.mubr.f32.mxu0 %v803
      %971 = vmatmul.mubr.f32.gmra.mrb[0].mxu0 %v802
      %v972 = vpop.f32.mrb[0].mxu0
      %v973 = vadd.f32 %v859, %v972
      %v974 = vpop.f32.mrb[0].mxu0
      %975 = vmatprep.mubr.f32.mxu0 %v805
      %976 = vmatmul.mubr.f32.gmra.mrb[0].mxu0 %v804
      %v977 = vpop.f32.mrb[0].mxu0
      %v978 = vadd.f32 %v859, %v977
      %v979 = vpop.f32.mrb[0].mxu0
      %980 = vmatprep.mubr.f32.mxu0 %v807
      %981 = vmatmul.mubr.f32.gmra.mrb[0].mxu0 %v806
      %v982 = vpop.f32.mrb[0].mxu0
      %v983 = vadd.f32 %v859, %v982
      %v984 = vpop.f32.mrb[0].mxu0
      %985 = vmatprep.mubr.f32.mxu0 %v809
      %986 = vmatmul.mubr.f32.gmra.mrb[0].mxu0 %v808
      %v987 = vpop.f32.mrb[0].mxu0
      %v988 = vadd.f32 %v859, %v987
      %v989 = vpop.f32.mrb[0].mxu0
      %990 = vmatprep.mubr.f32.mxu0 %v811
      %991 = vmatmul.mubr.f32.gmra.mrb[0].mxu0 %v810
      %v992 = vpop.f32.mrb[0].mxu0
      %v993 = vadd.f32 %v859, %v992
      %v994 = vpop.f32.mrb[0].mxu0
      %995 = vmatprep.mubr.f32.mxu0 %v813
      %996 = vmatmul.mubr.f32.gmra.mrb[0].mxu0 %v812
      %v997 = vpop.f32.mrb[0].mxu0
      %v998 = vadd.f32 %v859, %v997
      %v999 = vpop.f32.mrb[0].mxu0
      %1000 = vmatprep.mubr.f32.mxu0 %v815
      %1001 = vmatmul.mubr.f32.gmra.mrb[0].mxu0 %v814
      %v1002 = vpop.f32.mrb[0].mxu0
      %v1003 = vadd.f32 %v859, %v1002
      %v1004 = vpop.f32.mrb[0].mxu0
      %1005 = vmatprep.mubr.f32.mxu0 %v817
      %1006 = vmatmul.mubr.f32.gmra.mrb[0].mxu0 %v816
      %v1007 = vpop.f32.mrb[0].mxu0
      %v1008 = vadd.f32 %v859, %v1007
      %v1009 = vpop.f32.mrb[0].mxu0
      %1010 = vmatprep.mubr.f32.mxu0 %v819
      %1011 = vmatmul.mubr.f32.gmra.mrb[0].mxu0 %v818
      %v1012 = vpop.f32.mrb[0].mxu0
      %v1013 = vadd.f32 %v859, %v1012
      %v1014 = vpop.f32.mrb[0].mxu0
      %1015 = vmatprep.mubr.f32.mxu0 %v821
      %1016 = vmatmul.mubr.f32.gmra.mrb[0].mxu0 %v820
      %v1017 = vpop.f32.mrb[0].mxu0
      %v1018 = vadd.f32 %v859, %v1017
      %v1019 = vpop.f32.mrb[0].mxu0
      %1020 = vdwg.mxu0
      %v1021 = vtanh.pop %v928
      %v1022 = vtanh.pop %v933
      %v1023 = vtanh.pop %v938
      %v1024 = vtanh.pop %v943
      %v1025 = vtanh.pop %v948
      %v1026 = vtanh.pop %v953
      %v1027 = vtanh.pop %v958
      %v1028 = vtanh.pop %v963
      %v1029 = vtanh.pop %v968
      %v1030 = vtanh.pop %v973
      %v1031 = vtanh.pop %v978
      %v1032 = vtanh.pop %v983
      %v1033 = vtanh.pop %v988
      %v1034 = vtanh.pop %v993
      %v1035 = vtanh.pop %v998
      %v1036 = vtanh.pop %v1003
      %v1037 = vtanh.pop %v1008
      %v1038 = vtanh.pop %v1013
      %v1039 = vtanh.pop %v1018
      %v1040 = vld [vmem:[%s6] sm:$0xff]
      %v1041 = vld [vmem:[%s6 + $0x8] sm:$0xff]
      %v1042 = vld [vmem:[%s6 + $0x10] sm:$0xff]
      %v1043 = vld [vmem:[%s6 + $0x18] sm:$0xff]
      %v1044 = vld [vmem:[%s6 + $0x20] sm:$0xff]
      %v1045 = vld [vmem:[%s6 + $0x28] sm:$0xff]
      %v1046 = vld [vmem:[%s6 + $0x30] sm:$0xff]
      %v1047 = vld [vmem:[%s6 + $0x38] sm:$0xff]
      %v1048 = vld [vmem:[%s7] sm:$0x1]
      %v1050 = vlaneseq
      %v1051 = vshrl.u32 %v1050, 7
      %v1052 = vsub.s32 0, %v1051
      %v1053 = vrot.slane %v1048, %v1052
      %v1056 = vsel %vm547, %v1021, 0
      %v1059 = vsel %vm547, %v1022, 0
      %v1062 = vsel %vm547, %v1023, 0
      %v1065 = vsel %vm547, %v1024, 0
      %v1068 = vsel %vm547, %v1025, 0
      %v1071 = vsel %vm547, %v1026, 0
      %v1074 = vsel %vm547, %v1027, 0
      %v1077 = vsel %vm547, %v1028, 0
      %v1080 = vsel %vm547, %v1029, 0
      %v1083 = vsel %vm547, %v1030, 0
      %v1086 = vsel %vm547, %v1031, 0
      %v1089 = vsel %vm547, %v1032, 0
      %v1092 = vsel %vm547, %v1033, 0
      %v1095 = vsel %vm547, %v1034, 0
      %v1098 = vsel %vm547, %v1035, 0
      %v1101 = vsel %vm547, %v1036, 0
      %v1104 = vsel %vm547, %v1037, 0
      %v1107 = vsel %vm547, %v1038, 0
      %v1110 = vsel %vm547, %v1039, 0
      %1112 = vmatprep.subr.mxu0 0.0
      %1113 = vmatpush1.msra.mxu0 %v1040
      %1114 = vmatprep.subr.mxu0 0.0
      %1115 = vmatpush1.msra.mxu0 %v1041
      %1116 = vmatprep.subr.mxu0 0.0
      %1117 = vmatpush1.msra.mxu0 %v1042
      %1118 = vmatprep.subr.mxu0 0.0
      %1119 = vmatpush1.msra.mxu0 %v1043
      %1120 = vmatprep.subr.mxu0 0.0
      %1121 = vmatpush1.msra.mxu0 %v1044
      %1122 = vmatprep.subr.mxu0 0.0
      %1123 = vmatpush1.msra.mxu0 %v1045
      %1124 = vmatprep.subr.mxu0 0.0
      %1125 = vmatpush1.msra.mxu0 %v1046
      %1126 = vmatprep.subr.mxu0 0.0
      %1127 = vmatpush1.msra.mxu0 %v1047
      %1128 = vmatprep.subr.mxu0 0.0
      %1129 = vmatpush1.msra.mxu0 0.0
      %1130 = vmatprep.subr.mxu0 0.0
      %1131 = vmatpush1.msra.mxu0 0.0
      %1132 = vmatprep.subr.mxu0 0.0
      %1133 = vmatpush1.msra.mxu0 0.0
      %1134 = vmatprep.subr.mxu0 0.0
      %1135 = vmatpush1.msra.mxu0 0.0
      %1136 = vmatprep.subr.mxu0 0.0
      %1137 = vmatpush1.msra.mxu0 0.0
      %1138 = vmatprep.subr.mxu0 0.0
      %1139 = vmatpush1.msra.mxu0 0.0
      %1140 = vmatprep.subr.mxu0 0.0
      %1141 = vmatpush1.msra.mxu0 0.0
      %1142 = vmatprep.subr.mxu0 0.0
      %1143 = vmatpush1.msra.mxu0 0.0
      %1144 = vmatprep.subr.mxu0 0.0
      %1145 = vmatpush1.msra.mxu0 0.0
      %1146 = vmatprep.subr.mxu0 0.0
      %1147 = vmatpush1.msra.mxu0 0.0
      %1148 = vmatprep.subr.mxu0 0.0
      %1149 = vmatpush1.msra.mxu0 0.0
      %1150 = vmatprep.subr.mxu0 0.0
      %1151 = vmatpush1.msra.mxu0 0.0
      %1152 = vmatprep.subr.mxu0 0.0
      %1153 = vmatpush1.msra.mxu0 0.0
      %1154 = vmatprep.subr.mxu0 0.0
      %1155 = vmatpush1.msra.mxu0 0.0
      %1156 = vmatprep.subr.mxu0 0.0
      %1157 = vmatpush1.msra.mxu0 0.0
      %1158 = vmatprep.subr.mxu0 0.0
      %1159 = vmatpush1.msra.mxu0 0.0
      %1160 = vmatprep.subr.mxu0 0.0
      %1161 = vmatpush1.msra.mxu0 0.0
      %1162 = vmatprep.subr.mxu0 0.0
      %1163 = vmatpush1.msra.mxu0 0.0
      %1164 = vmatprep.subr.mxu0 0.0
      %1165 = vmatpush1.msra.mxu0 0.0
      %1166 = vmatprep.subr.mxu0 0.0
      %1167 = vmatpush1.msra.mxu0 0.0
      %1168 = vmatprep.subr.mxu0 0.0
      %1169 = vmatpush1.msra.mxu0 0.0
      %1170 = vmatprep.subr.mxu0 0.0
      %1171 = vmatpush1.msra.mxu0 0.0
      %1172 = vmatprep.subr.mxu0 0.0
      %1173 = vmatpush1.msra.mxu0 0.0
      %1174 = vmatprep.subr.mxu0 0.0
      %1175 = vmatpush1.msra.mxu0 0.0
      %1176 = vmatprep.mubr.f32.mxu0 0.0
      %1177 = vmatmul.mubr.f32.gmra.mrb[0].mxu0 %v1056
      %v1178 = vpop.f32.mrb[0].mxu0
      %v1179 = vadd.f32 %v1053, %v1178
      %v1180 = vpop.f32.mrb[0].mxu0
      %1181 = vmatprep.mubr.f32.mxu0 0.0
      %1182 = vmatmul.mubr.f32.gmra.mrb[0].mxu0 %v1059
      %v1183 = vpop.f32.mrb[0].mxu0
      %v1184 = vadd.f32 %v1053, %v1183
      %v1185 = vpop.f32.mrb[0].mxu0
      %1186 = vmatprep.mubr.f32.mxu0 0.0
      %1187 = vmatmul.mubr.f32.gmra.mrb[0].mxu0 %v1062
      %v1188 = vpop.f32.mrb[0].mxu0
      %v1189 = vadd.f32 %v1053, %v1188
      %v1190 = vpop.f32.mrb[0].mxu0
      %1191 = vmatprep.mubr.f32.mxu0 0.0
      %1192 = vmatmul.mubr.f32.gmra.mrb[0].mxu0 %v1065
      %v1193 = vpop.f32.mrb[0].mxu0
      %v1194 = vadd.f32 %v1053, %v1193
      %v1195 = vpop.f32.mrb[0].mxu0
      %1196 = vmatprep.mubr.f32.mxu0 0.0
      %1197 = vmatmul.mubr.f32.gmra.mrb[0].mxu0 %v1068
      %v1198 = vpop.f32.mrb[0].mxu0
      %v1199 = vadd.f32 %v1053, %v1198
      %v1200 = vpop.f32.mrb[0].mxu0
      %1201 = vmatprep.mubr.f32.mxu0 0.0
      %1202 = vmatmul.mubr.f32.gmra.mrb[0].mxu0 %v1071
      %v1203 = vpop.f32.mrb[0].mxu0
      %v1204 = vadd.f32 %v1053, %v1203
      %v1205 = vpop.f32.mrb[0].mxu0
      %1206 = vmatprep.mubr.f32.mxu0 0.0
      %1207 = vmatmul.mubr.f32.gmra.mrb[0].mxu0 %v1074
      %v1208 = vpop.f32.mrb[0].mxu0
      %v1209 = vadd.f32 %v1053, %v1208
      %v1210 = vpop.f32.mrb[0].mxu0
      %1211 = vmatprep.mubr.f32.mxu0 0.0
      %1212 = vmatmul.mubr.f32.gmra.mrb[0].mxu0 %v1077
      %v1213 = vpop.f32.mrb[0].mxu0
      %v1214 = vadd.f32 %v1053, %v1213
      %v1215 = vpop.f32.mrb[0].mxu0
      %1216 = vmatprep.mubr.f32.mxu0 0.0
      %1217 = vmatmul.mubr.f32.gmra.mrb[0].mxu0 %v1080
      %v1218 = vpop.f32.mrb[0].mxu0
      %v1219 = vadd.f32 %v1053, %v1218
      %v1220 = vpop.f32.mrb[0].mxu0
      %1221 = vmatprep.mubr.f32.mxu0 0.0
      %1222 = vmatmul.mubr.f32.gmra.mrb[0].mxu0 %v1083
      %v1223 = vpop.f32.mrb[0].mxu0
      %v1224 = vadd.f32 %v1053, %v1223
      %v1225 = vpop.f32.mrb[0].mxu0
      %1226 = vmatprep.mubr.f32.mxu0 0.0
      %1227 = vmatmul.mubr.f32.gmra.mrb[0].mxu0 %v1086
      %v1228 = vpop.f32.mrb[0].mxu0
      %v1229 = vadd.f32 %v1053, %v1228
      %v1230 = vpop.f32.mrb[0].mxu0
      %1231 = vmatprep.mubr.f32.mxu0 0.0
      %1232 = vmatmul.mubr.f32.gmra.mrb[0].mxu0 %v1089
      %v1233 = vpop.f32.mrb[0].mxu0
      %v1234 = vadd.f32 %v1053, %v1233
      %v1235 = vpop.f32.mrb[0].mxu0
      %1236 = vmatprep.mubr.f32.mxu0 0.0
      %1237 = vmatmul.mubr.f32.gmra.mrb[0].mxu0 %v1092
      %v1238 = vpop.f32.mrb[0].mxu0
      %v1239 = vadd.f32 %v1053, %v1238
      %v1240 = vpop.f32.mrb[0].mxu0
      %1241 = vmatprep.mubr.f32.mxu0 0.0
      %1242 = vmatmul.mubr.f32.gmra.mrb[0].mxu0 %v1095
      %v1243 = vpop.f32.mrb[0].mxu0
      %v1244 = vadd.f32 %v1053, %v1243
      %v1245 = vpop.f32.mrb[0].mxu0
      %1246 = vmatprep.mubr.f32.mxu0 0.0
      %1247 = vmatmul.mubr.f32.gmra.mrb[0].mxu0 %v1098
      %v1248 = vpop.f32.mrb[0].mxu0
      %v1249 = vadd.f32 %v1053, %v1248
      %v1250 = vpop.f32.mrb[0].mxu0
      %1251 = vmatprep.mubr.f32.mxu0 0.0
      %1252 = vmatmul.mubr.f32.gmra.mrb[0].mxu0 %v1101
      %v1253 = vpop.f32.mrb[0].mxu0
      %v1254 = vadd.f32 %v1053, %v1253
      %v1255 = vpop.f32.mrb[0].mxu0
      %1256 = vmatprep.mubr.f32.mxu0 0.0
      %1257 = vmatmul.mubr.f32.gmra.mrb[0].mxu0 %v1104
      %v1258 = vpop.f32.mrb[0].mxu0
      %v1259 = vadd.f32 %v1053, %v1258
      %v1260 = vpop.f32.mrb[0].mxu0
      %1261 = vmatprep.mubr.f32.mxu0 0.0
      %1262 = vmatmul.mubr.f32.gmra.mrb[0].mxu0 %v1107
      %v1263 = vpop.f32.mrb[0].mxu0
      %v1264 = vadd.f32 %v1053, %v1263
      %v1265 = vpop.f32.mrb[0].mxu0
      %1266 = vmatprep.mubr.f32.mxu0 0.0
      %1267 = vmatmul.mubr.f32.gmra.mrb[0].mxu0 %v1110
      %v1268 = vpop.f32.mrb[0].mxu0
      %v1269 = vadd.f32 %v1053, %v1268
      %v1270 = vpop.f32.mrb[0].mxu0
      %1271 = vdwg.mxu0
      %v1272 = vtanh.pop %v1179
      %v1273 = vtanh.pop %v1184
      %v1274 = vtanh.pop %v1189
      %v1275 = vtanh.pop %v1194
      %v1276 = vtanh.pop %v1199
      %v1277 = vtanh.pop %v1204
      %v1278 = vtanh.pop %v1209
      %v1279 = vtanh.pop %v1214
      %v1280 = vtanh.pop %v1219
      %v1281 = vtanh.pop %v1224
      %v1282 = vtanh.pop %v1229
      %v1283 = vtanh.pop %v1234
      %v1284 = vtanh.pop %v1239
      %v1285 = vtanh.pop %v1244
      %v1286 = vtanh.pop %v1249
      %v1287 = vtanh.pop %v1254
      %v1288 = vtanh.pop %v1259
      %v1289 = vtanh.pop %v1264
      %v1290 = vtanh.pop %v1269
      %v1291 = vld [vmem:[%s8] sm:$0xff]
      %v1292 = vld [vmem:[%s8 + $0x8] sm:$0xff]
      %v1293 = vld [vmem:[%s9] sm:$0x1]
      %v1295 = vlaneseq
      %v1296 = vshrl.u32 %v1295, 7
      %v1297 = vsub.s32 0, %v1296
      %v1298 = vrot.slane %v1293, %v1297
      %vm1300 = vcmask 130048
      %v1302 = vsel %vm1300, %v1272, 0
      %v1305 = vsel %vm1300, %v1273, 0
      %v1308 = vsel %vm1300, %v1274, 0
      %v1311 = vsel %vm1300, %v1275, 0
      %v1314 = vsel %vm1300, %v1276, 0
      %v1317 = vsel %vm1300, %v1277, 0
      %v1320 = vsel %vm1300, %v1278, 0
      %v1323 = vsel %vm1300, %v1279, 0
      %v1326 = vsel %vm1300, %v1280, 0
      %v1329 = vsel %vm1300, %v1281, 0
      %v1332 = vsel %vm1300, %v1282, 0
      %v1335 = vsel %vm1300, %v1283, 0
      %v1338 = vsel %vm1300, %v1284, 0
      %v1341 = vsel %vm1300, %v1285, 0
      %v1344 = vsel %vm1300, %v1286, 0
      %v1347 = vsel %vm1300, %v1287, 0
      %v1350 = vsel %vm1300, %v1288, 0
      %v1353 = vsel %vm1300, %v1289, 0
      %v1356 = vsel %vm1300, %v1290, 0
      %1358 = vmatprep.subr.mxu0 0.0
      %1359 = vmatpush1.msra.mxu0 %v1291
      %1360 = vmatprep.subr.mxu0 0.0
      %1361 = vmatpush1.msra.mxu0 %v1292
      %1362 = vmatprep.subr.mxu0 0.0
      %1363 = vmatpush1.msra.mxu0 0.0
      %1364 = vmatprep.subr.mxu0 0.0
      %1365 = vmatpush1.msra.mxu0 0.0
      %1366 = vmatprep.subr.mxu0 0.0
      %1367 = vmatpush1.msra.mxu0 0.0
      %1368 = vmatprep.subr.mxu0 0.0
      %1369 = vmatpush1.msra.mxu0 0.0
      %1370 = vmatprep.subr.mxu0 0.0
      %1371 = vmatpush1.msra.mxu0 0.0
      %1372 = vmatprep.subr.mxu0 0.0
      %1373 = vmatpush1.msra.mxu0 0.0
      %1374 = vmatprep.subr.mxu0 0.0
      %1375 = vmatpush1.msra.mxu0 0.0
      %1376 = vmatprep.subr.mxu0 0.0
      %1377 = vmatpush1.msra.mxu0 0.0
      %1378 = vmatprep.subr.mxu0 0.0
      %1379 = vmatpush1.msra.mxu0 0.0
      %1380 = vmatprep.subr.mxu0 0.0
      %1381 = vmatpush1.msra.mxu0 0.0
      %1382 = vmatprep.subr.mxu0 0.0
      %1383 = vmatpush1.msra.mxu0 0.0
      %1384 = vmatprep.subr.mxu0 0.0
      %1385 = vmatpush1.msra.mxu0 0.0
      %1386 = vmatprep.subr.mxu0 0.0
      %1387 = vmatpush1.msra.mxu0 0.0
      %1388 = vmatprep.subr.mxu0 0.0
      %1389 = vmatpush1.msra.mxu0 0.0
      %1390 = vmatprep.subr.mxu0 0.0
      %1391 = vmatpush1.msra.mxu0 0.0
      %1392 = vmatprep.subr.mxu0 0.0
      %1393 = vmatpush1.msra.mxu0 0.0
      %1394 = vmatprep.subr.mxu0 0.0
      %1395 = vmatpush1.msra.mxu0 0.0
      %1396 = vmatprep.subr.mxu0 0.0
      %1397 = vmatpush1.msra.mxu0 0.0
      %1398 = vmatprep.subr.mxu0 0.0
      %1399 = vmatpush1.msra.mxu0 0.0
      %1400 = vmatprep.subr.mxu0 0.0
      %1401 = vmatpush1.msra.mxu0 0.0
      %1402 = vmatprep.subr.mxu0 0.0
      %1403 = vmatpush1.msra.mxu0 0.0
      %1404 = vmatprep.subr.mxu0 0.0
      %1405 = vmatpush1.msra.mxu0 0.0
      %1406 = vmatprep.subr.mxu0 0.0
      %1407 = vmatpush1.msra.mxu0 0.0
      %1408 = vmatprep.subr.mxu0 0.0
      %1409 = vmatpush1.msra.mxu0 0.0
      %1410 = vmatprep.subr.mxu0 0.0
      %1411 = vmatpush1.msra.mxu0 0.0
      %1412 = vmatprep.subr.mxu0 0.0
      %1413 = vmatpush1.msra.mxu0 0.0
      %1414 = vmatprep.subr.mxu0 0.0
      %1415 = vmatpush1.msra.mxu0 0.0
      %1416 = vmatprep.subr.mxu0 0.0
      %1417 = vmatpush1.msra.mxu0 0.0
      %1418 = vmatprep.subr.mxu0 0.0
      %1419 = vmatpush1.msra.mxu0 0.0
      %1420 = vmatprep.subr.mxu0 0.0
      %1421 = vmatpush1.msra.mxu0 0.0
      %1422 = vmatprep.mubr.f32.mxu0 0.0
      %1423 = vmatmul.mubr.f32.gmra.mrb[0].mxu0 %v1302
      %v1424 = vpop.f32.mrb[0].mxu0
      %v1425 = vadd.f32 %v1298, %v1424
      %v1426 = vpop.f32.mrb[0].mxu0
      %1427 = vmatprep.mubr.f32.mxu0 0.0
      %1428 = vmatmul.mubr.f32.gmra.mrb[0].mxu0 %v1305
      %v1429 = vpop.f32.mrb[0].mxu0
      %v1430 = vadd.f32 %v1298, %v1429
      %v1431 = vpop.f32.mrb[0].mxu0
      %1432 = vmatprep.mubr.f32.mxu0 0.0
      %1433 = vmatmul.mubr.f32.gmra.mrb[0].mxu0 %v1308
      %v1434 = vpop.f32.mrb[0].mxu0
      %v1435 = vadd.f32 %v1298, %v1434
      %v1436 = vpop.f32.mrb[0].mxu0
      %1437 = vmatprep.mubr.f32.mxu0 0.0
      %1438 = vmatmul.mubr.f32.gmra.mrb[0].mxu0 %v1311
      %v1439 = vpop.f32.mrb[0].mxu0
      %v1440 = vadd.f32 %v1298, %v1439
      %v1441 = vpop.f32.mrb[0].mxu0
      %1442 = vmatprep.mubr.f32.mxu0 0.0
      %1443 = vmatmul.mubr.f32.gmra.mrb[0].mxu0 %v1314
      %v1444 = vpop.f32.mrb[0].mxu0
      %v1445 = vadd.f32 %v1298, %v1444
      %v1446 = vpop.f32.mrb[0].mxu0
      %1447 = vmatprep.mubr.f32.mxu0 0.0
      %1448 = vmatmul.mubr.f32.gmra.mrb[0].mxu0 %v1317
      %v1449 = vpop.f32.mrb[0].mxu0
      %v1450 = vadd.f32 %v1298, %v1449
      %v1451 = vpop.f32.mrb[0].mxu0
      %1452 = vmatprep.mubr.f32.mxu0 0.0
      %1453 = vmatmul.mubr.f32.gmra.mrb[0].mxu0 %v1320
      %v1454 = vpop.f32.mrb[0].mxu0
      %v1455 = vadd.f32 %v1298, %v1454
      %v1456 = vpop.f32.mrb[0].mxu0
      %1457 = vmatprep.mubr.f32.mxu0 0.0
      %1458 = vmatmul.mubr.f32.gmra.mrb[0].mxu0 %v1323
      %v1459 = vpop.f32.mrb[0].mxu0
      %v1460 = vadd.f32 %v1298, %v1459
      %v1461 = vpop.f32.mrb[0].mxu0
      %1462 = vmatprep.mubr.f32.mxu0 0.0
      %1463 = vmatmul.mubr.f32.gmra.mrb[0].mxu0 %v1326
      %v1464 = vpop.f32.mrb[0].mxu0
      %v1465 = vadd.f32 %v1298, %v1464
      %v1466 = vpop.f32.mrb[0].mxu0
      %1467 = vmatprep.mubr.f32.mxu0 0.0
      %1468 = vmatmul.mubr.f32.gmra.mrb[0].mxu0 %v1329
      %v1469 = vpop.f32.mrb[0].mxu0
      %v1470 = vadd.f32 %v1298, %v1469
      %v1471 = vpop.f32.mrb[0].mxu0
      %1472 = vmatprep.mubr.f32.mxu0 0.0
      %1473 = vmatmul.mubr.f32.gmra.mrb[0].mxu0 %v1332
      %v1474 = vpop.f32.mrb[0].mxu0
      %v1475 = vadd.f32 %v1298, %v1474
      %v1476 = vpop.f32.mrb[0].mxu0
      %1477 = vmatprep.mubr.f32.mxu0 0.0
      %1478 = vmatmul.mubr.f32.gmra.mrb[0].mxu0 %v1335
      %v1479 = vpop.f32.mrb[0].mxu0
      %v1480 = vadd.f32 %v1298, %v1479
      %v1481 = vpop.f32.mrb[0].mxu0
      %1482 = vmatprep.mubr.f32.mxu0 0.0
      %1483 = vmatmul.mubr.f32.gmra.mrb[0].mxu0 %v1338
      %v1484 = vpop.f32.mrb[0].mxu0
      %v1485 = vadd.f32 %v1298, %v1484
      %v1486 = vpop.f32.mrb[0].mxu0
      %1487 = vmatprep.mubr.f32.mxu0 0.0
      %1488 = vmatmul.mubr.f32.gmra.mrb[0].mxu0 %v1341
      %v1489 = vpop.f32.mrb[0].mxu0
      %v1490 = vadd.f32 %v1298, %v1489
      %v1491 = vpop.f32.mrb[0].mxu0
      %1492 = vmatprep.mubr.f32.mxu0 0.0
      %1493 = vmatmul.mubr.f32.gmra.mrb[0].mxu0 %v1344
      %v1494 = vpop.f32.mrb[0].mxu0
      %v1495 = vadd.f32 %v1298, %v1494
      %v1496 = vpop.f32.mrb[0].mxu0
      %1497 = vmatprep.mubr.f32.mxu0 0.0
      %1498 = vmatmul.mubr.f32.gmra.mrb[0].mxu0 %v1347
      %v1499 = vpop.f32.mrb[0].mxu0
      %v1500 = vadd.f32 %v1298, %v1499
      %v1501 = vpop.f32.mrb[0].mxu0
      %1502 = vmatprep.mubr.f32.mxu0 0.0
      %1503 = vmatmul.mubr.f32.gmra.mrb[0].mxu0 %v1350
      %v1504 = vpop.f32.mrb[0].mxu0
      %v1505 = vadd.f32 %v1298, %v1504
      %v1506 = vpop.f32.mrb[0].mxu0
      %1507 = vmatprep.mubr.f32.mxu0 0.0
      %1508 = vmatmul.mubr.f32.gmra.mrb[0].mxu0 %v1353
      %v1509 = vpop.f32.mrb[0].mxu0
      %v1510 = vadd.f32 %v1298, %v1509
      %v1511 = vpop.f32.mrb[0].mxu0
      %1512 = vmatprep.mubr.f32.mxu0 0.0
      %1513 = vmatmul.mubr.f32.gmra.mrb[0].mxu0 %v1356
      %v1514 = vpop.f32.mrb[0].mxu0
      %v1515 = vadd.f32 %v1298, %v1514
      %v1516 = vpop.f32.mrb[0].mxu0
      %1517 = vdwg.mxu0
      %vm1518 = vcmask 64512
      %1519 = vst.msk [vmem:[%s383] sm:$0xff] %vm1518, %v1425
      %1520 = vst.msk [vmem:[%s383 + $0x8] sm:$0xff] %vm1518, %v1430
      %1521 = vst.msk [vmem:[%s383 + $0x10] sm:$0xff] %vm1518, %v1435
      %1522 = vst.msk [vmem:[%s383 + $0x18] sm:$0xff] %vm1518, %v1440
      %1523 = vst.msk [vmem:[%s383 + $0x20] sm:$0xff] %vm1518, %v1445
      %1524 = vst.msk [vmem:[%s383 + $0x28] sm:$0xff] %vm1518, %v1450
      %1525 = vst.msk [vmem:[%s383 + $0x30] sm:$0xff] %vm1518, %v1455
      %1526 = vst.msk [vmem:[%s383 + $0x38] sm:$0xff] %vm1518, %v1460
      %1527 = vst.msk [vmem:[%s383 + $0x40] sm:$0xff] %vm1518, %v1465
      %1528 = vst.msk [vmem:[%s383 + $0x48] sm:$0xff] %vm1518, %v1470
      %1529 = vst.msk [vmem:[%s383 + $0x50] sm:$0xff] %vm1518, %v1475
      %1530 = vst.msk [vmem:[%s383 + $0x58] sm:$0xff] %vm1518, %v1480
      %1531 = vst.msk [vmem:[%s383 + $0x60] sm:$0xff] %vm1518, %v1485
      %1532 = vst.msk [vmem:[%s383 + $0x68] sm:$0xff] %vm1518, %v1490
      %1533 = vst.msk [vmem:[%s383 + $0x70] sm:$0xff] %vm1518, %v1495
      %1534 = vst.msk [vmem:[%s383 + $0x78] sm:$0xff] %vm1518, %v1500
      %1535 = vst.msk [vmem:[%s383 + $0x80] sm:$0xff] %vm1518, %v1505
      %1536 = vst.msk [vmem:[%s383 + $0x88] sm:$0xff] %vm1518, %v1510
      %1537 = vst.msk [vmem:[%s383 + $0x90] sm:$0xff] %vm1518, %v1515
      %s1538 = smul.u32 19, %s21
      %p1539 = scmp.lt.s32.totalorder %s1538, 37
      %s1540 = scalar_select %p1539, %s1538, 37
      %s1541 = smul.addr %s1540, 8
      %s1542 = scalar_lea.vmem %s10, %s1541
      // Predicated region
      $region61: #{tpu_custom_call.1} parent=59 // pred_check
        %p1543 = pneg %p259
      $region62: #{tpu_custom_call.1} parent=59 // pred_check_branch
        %1545 = sbr.rel (%p1543) target = $region64
      $region63: #{tpu_custom_call.1} parent=59 // pred_region
        %s1546 = smul.u32 19, %s21
      $region64: #{tpu_custom_call.1} parent=59 // pred_fallthru
        _
    $region60: #{tpu_custom_call.1} parent=5 // pred_fallthru
      _
    %p1547 = scmp.le.s32.totalorder 2, %s16
    // Predicated region
    $region65: #{tpu_custom_call.1} parent=5 // pred_check
      %p1548 = pneg %p1547
    $region66: #{tpu_custom_call.1} parent=5 // pred_check_branch
      %1550 = sbr.rel (%p1548) target = $region68
    $region67: #{tpu_custom_call.1} parent=5 // pred_region
      %s1551 = ssub.s32 %s16, 2
      // Predicated region
      $region69: #{tpu_custom_call.1} parent=67 // pred_check
        %p1552 = pneg %p265
      $region70: #{tpu_custom_call.1} parent=67 // pred_check_branch
        %1554 = sbr.rel (%p1552) target = $region72
      $region71: #{tpu_custom_call.1} parent=67 // pred_region
        %s1555 = smul.u32 19, %s22
        %p1556 = scmp.lt.s32.totalorder %s1555, 37
        %s1557 = scalar_select %p1556, %s1555, 37
        %s1558 = smul.addr %s1557, 8
        %s1559 = scalar_lea.vmem %s10, %s1558
      $region72: #{tpu_custom_call.1} parent=67 // pred_fallthru
        _
    $region68: #{tpu_custom_call.1} parent=5 // pred_fallthru
      _
  $region6: #{tpu_custom_call.1} parent=0 // loop_footer
    %s20 = sadd.s32 1, %s16
  $region7: #{tpu_custom_call.1} parent=0 // loop_footer_branch
    %15 = sbr.rel target = $region3
  $region8: #{tpu_custom_call.1} parent=0 // loop_exit
    _

</llo_original>
